<compile_context>
chip_gen: v7x
topology: tpu7x:2x2x1
jax: 0.10.0
libtpu: 0.0.40
codegen_flags: <defaults>
</compile_context>

<pallas_src>
import functools

import numpy as np
import jax
import jax.numpy as jnp
from jax.experimental import pallas as pl
from jax.experimental.pallas import tpu as pltpu


def _lane_shift_zero(a, off):
    """out[:, j] = a[:, j + off] if 0 <= j + off < N else 0 (static off).

    Unambiguous zero-filled lane shift (2-piece lane concat).  For very wide
    HW, pltpu.roll((-off) % N) + edge masks is the XLU-slot alternative.
    """
    if off == 0:
        return a
    n = a.shape[1]
    pad = jnp.zeros((a.shape[0], abs(off)), a.dtype)
    if off > 0:
        return jnp.concatenate([a[:, off:], pad], axis=1)
    return jnp.concatenate([pad, a[:, :n + off]], axis=1)


# ------------------------------------------------------------ fused kernel ---
def _mask_branch_kernel(x_ref, mnl_ref, mnf_ref, *refs, H, W, dim, kd, num_convs):
    # refs layout: [w0, b0, w1, b1, ..., proj_w, proj_b, out]
    conv_w = [refs[2 * i] for i in range(num_convs)]        # (9*dim, cin)  bf16
    conv_b = [refs[2 * i + 1] for i in range(num_convs)]    # (dim, 1)      f32
    pw_ref, pb_ref, o_ref = refs[2 * num_convs:2 * num_convs + 3]

    HW = H * W
    not_last = mnl_ref[...]    # (1, HW) f32: zeros at column W-1 (used for dx=-1)
    not_first = mnf_ref[...]   # (1, HW) f32: zeros at column 0   (used for dx=+1)

    def conv3x3_relu(act, w_ref, b_ref):
        # act: (cin, HW) f32, lane-dense.  Pre-mask the W boundary per dx in
        # f32, cast once to bf16, then 9 per-tap MXU matmuls accumulated in
        # f32.  The H boundary is exactly the zero fill of the lane shift.
        src = {
            -1: (act * not_last).astype(jnp.bfloat16),
            0: act.astype(jnp.bfloat16),
            1: (act * not_first).astype(jnp.bfloat16),
        }
        acc = None
        for dy in (-1, 0, 1):
            for dx in (-1, 0, 1):
                t = (dy + 1) * 3 + (dx + 1)
                taps = _lane_shift_zero(src[dx], dy * W + dx)        # (cin, HW)
                y = jnp.dot(w_ref[t * dim:(t + 1) * dim, :], taps,
                            preferred_element_type=jnp.float32)     # (dim, HW)
                acc = y if acc is None else acc + y
        return jnp.maximum(acc + b_ref[...], 0.0)                    # (dim, HW) f32

    act = x_ref[...]                                                  # (Cin, HW) f32
    for i in range(num_convs):
        act = conv3x3_relu(act, conv_w[i], conv_b[i])

    # 1x1 projection: weight as LHS -> lane-dense (kd, HW) output, which is
    # exactly flattened NCHW (no output transpose needed in the wrapper).
    proj = jnp.dot(pw_ref[...], act.astype(jnp.bfloat16),
                   preferred_element_type=jnp.float32)
    o_ref[...] = proj + pb_ref[...]


# ----------------------------------------------------------------- wrapper ---
def mask_branch_forward(features_nchw, params, cfg):
    """Fused Pallas forward for MaskBranch.  features_nchw: (B, Cin, H, W)."""
    dim = cfg["hidden_dim"]
    kd = cfg["kernel_dim"]
    num_convs = cfg["num_convs"]
    B, Cin, H, W = features_nchw.shape
    HW = H * W

    # NCHW flattened = channel-major (C, HW) per image; free metadata reshape.
    x = features_nchw.reshape(B, Cin, HW)

    # W-boundary masks (constant, built host-side).
    col = np.arange(HW, dtype=np.int32) % W
    not_last = jnp.asarray((col < W - 1).astype(np.float32).reshape(1, HW))
    not_first = jnp.asarray((col > 0).astype(np.float32).reshape(1, HW))

    in_specs = [
        pl.BlockSpec((None, Cin, HW), lambda b: (b, 0, 0)),
        pl.BlockSpec((1, HW), lambda b: (0, 0)),
        pl.BlockSpec((1, HW), lambda b: (0, 0)),
    ]

    # Flatten conv weights once (tiny XLA ops): (O, I, 3, 3) -> (9*dim, I)
    # with rows grouped by tap t = (dy+1)*3 + (dx+1); cast to bf16 for the MXU.
    conv_args = []
    c = Cin
    for (w_oihw, bias) in params["mask_convs"]:
        wt = jnp.transpose(w_oihw, (2, 3, 0, 1)).reshape(9 * dim, c)
        conv_args += [wt.astype(jnp.bfloat16),
                      bias.reshape(dim, 1).astype(jnp.float32)]
        in_specs += [pl.BlockSpec((9 * dim, c), lambda b: (0, 0)),
                     pl.BlockSpec((dim, 1), lambda b: (0, 0))]
        c = dim

    pw = params["proj_w"].reshape(kd, dim).astype(jnp.bfloat16)
    pb = params["proj_b"].reshape(kd, 1).astype(jnp.float32)
    in_specs += [pl.BlockSpec((kd, dim), lambda b: (0, 0)),
                 pl.BlockSpec((kd, 1), lambda b: (0, 0))]

    kernel = functools.partial(_mask_branch_kernel, H=H, W=W, dim=dim, kd=kd,
                               num_convs=num_convs)
    out = pl.pallas_call(
        kernel,
        out_shape=jax.ShapeDtypeStruct((B, kd, HW), jnp.float32),
        grid=(B,),
        in_specs=in_specs,
        out_specs=pl.BlockSpec((None, kd, HW), lambda b: (b, 0, 0)),
        compiler_params=pltpu.CompilerParams(
            dimension_semantics=("parallel",),
            vmem_limit_bytes=32 * 1024 * 1024),
    )(x, not_last, not_first, *conv_args, pw, pb)

    return out.reshape(B, kd, H, W)                                   # NCHW output


# -------------------------------------------------------- pure-JAX reference -
def reference_forward(features_nchw, params, cfg):
    kd = cfg["kernel_dim"]
    dn = ("NCHW", "OIHW", "NCHW")
    x = features_nchw
    for (w, b) in params["mask_convs"]:
        x = jax.lax.conv_general_dilated(x, w, (1, 1), "SAME",
                                         dimension_numbers=dn,
                                         precision=jax.lax.Precision.HIGHEST)
        x = jnp.maximum(x + b.reshape(1, -1, 1, 1), 0.0)
    x = jax.lax.conv_general_dilated(x, params["proj_w"], (1, 1), "VALID",
                                     dimension_numbers=dn,
                                     precision=jax.lax.Precision.HIGHEST)
    return x + params["proj_b"].reshape(1, kd, 1, 1)


# ------------------------------------------------------------------- main ----
if __name__ == "__main__":
    # small config consistent with the module: hidden_dim=32, num_convs=2,
    # kernel_dim=32; input (B=2, Cin=4, H=W=16)
    cfg = dict(hidden_dim=32, num_convs=2, kernel_dim=32)
    B, Cin, H, W = 2, 4, 16, 16
    dim, kd, nc = cfg["hidden_dim"], cfg["kernel_dim"], cfg["num_convs"]

    key = jax.random.PRNGKey(0)
    ks = jax.random.split(key, 2 * nc + 3)

    params = {"mask_convs": []}
    c = Cin
    for i in range(nc):
        w = 0.1 * jax.random.normal(ks[2 * i], (dim, c, 3, 3), jnp.float32)   # OIHW
        b = 0.1 * jax.random.normal(ks[2 * i + 1], (dim,), jnp.float32)
        params["mask_convs"].append((w, b))
        c = dim
    params["proj_w"] = 0.1 * jax.random.normal(ks[2 * nc], (kd, dim, 1, 1), jnp.float32)
    params["proj_b"] = 0.1 * jax.random.normal(ks[2 * nc + 1], (kd,), jnp.float32)

    features = jax.random.normal(ks[2 * nc + 2], (B, Cin, H, W), jnp.float32)

    out = mask_branch_forward(features, params, cfg)
    out = jax.block_until_ready(out)

    ref = reference_forward(features, params, cfg)
    assert out.shape == (B, kd, H, W)
    max_err = float(np.abs(np.asarray(out) - np.asarray(ref)).max())
    # bf16 MXU operands vs the f32 HIGHEST-precision reference -> loosened tol.
    assert np.allclose(np.asarray(out), np.asarray(ref), rtol=5e-2, atol=5e-2), max_err

    print("KERNEL_OK")
</pallas_src>

<mosaic_0001>
module attributes {stable_mosaic.version = 11 : i64} {
  func.func @_mask_branch_kernel(%arg0: i32, %arg1: memref<1x4x256xf32, #tpu.memory_space<vmem>>, %arg2: memref<1x256xf32, #tpu.memory_space<vmem>>, %arg3: memref<1x256xf32, #tpu.memory_space<vmem>>, %arg4: memref<288x4xbf16, #tpu.memory_space<vmem>>, %arg5: memref<32x1xf32, #tpu.memory_space<vmem>>, %arg6: memref<288x32xbf16, #tpu.memory_space<vmem>>, %arg7: memref<32x1xf32, #tpu.memory_space<vmem>>, %arg8: memref<32x32xbf16, #tpu.memory_space<vmem>>, %arg9: memref<32x1xf32, #tpu.memory_space<vmem>>, %arg10: memref<1x32x256xf32, #tpu.memory_space<vmem>>) attributes {dimension_semantics = [#tpu.dimension_semantics<parallel>], iteration_bounds = array<i64: 2>, scalar_prefetch = 0 : i64, scratch_operands = 0 : i64, tpu.core_type = #tpu.core_type<tc>, window_params = [{transform_indices = @transform_0, window_bounds = array<i64: 1, 4, 256>}, {pipeline_mode = #tpu.pipeline_mode<synchronous>, transform_indices = @transform_1, window_bounds = array<i64: 1, 256>}, {pipeline_mode = #tpu.pipeline_mode<synchronous>, transform_indices = @transform_2, window_bounds = array<i64: 1, 256>}, {pipeline_mode = #tpu.pipeline_mode<synchronous>, transform_indices = @transform_3, window_bounds = array<i64: 288, 4>}, {pipeline_mode = #tpu.pipeline_mode<synchronous>, transform_indices = @transform_4, window_bounds = array<i64: 32, 1>}, {pipeline_mode = #tpu.pipeline_mode<synchronous>, transform_indices = @transform_5, window_bounds = array<i64: 288, 32>}, {pipeline_mode = #tpu.pipeline_mode<synchronous>, transform_indices = @transform_6, window_bounds = array<i64: 32, 1>}, {pipeline_mode = #tpu.pipeline_mode<synchronous>, transform_indices = @transform_7, window_bounds = array<i64: 32, 32>}, {pipeline_mode = #tpu.pipeline_mode<synchronous>, transform_indices = @transform_8, window_bounds = array<i64: 32, 1>}, {transform_indices = @transform_9, window_bounds = array<i64: 1, 32, 256>}]} {
    %c0 = arith.constant 0 : index
    %c0_0 = arith.constant 0 : index
    %0 = vector.load %arg2[%c0, %c0_0] : memref<1x256xf32, #tpu.memory_space<vmem>>, vector<1x256xf32>
    %c0_1 = arith.constant 0 : index
    %c0_2 = arith.constant 0 : index
    %1 = vector.load %arg3[%c0_1, %c0_2] : memref<1x256xf32, #tpu.memory_space<vmem>>, vector<1x256xf32>
    %c0_3 = arith.constant 0 : index
    %c0_4 = arith.constant 0 : index
    %c0_5 = arith.constant 0 : index
    %2 = vector.load %arg1[%c0_3, %c0_4, %c0_5] : memref<1x4x256xf32, #tpu.memory_space<vmem>>, vector<1x4x256xf32>
    %3 = vector.shape_cast %2 : vector<1x4x256xf32> to vector<4x256xf32>
    %4 = vector.broadcast %0 : vector<1x256xf32> to vector<4x256xf32>
    %5 = arith.mulf %3, %4 : vector<4x256xf32>
    %6 = arith.truncf %5 : vector<4x256xf32> to vector<4x256xbf16>
    %7 = arith.truncf %3 : vector<4x256xf32> to vector<4x256xbf16>
    %8 = vector.broadcast %1 : vector<1x256xf32> to vector<4x256xf32>
    %9 = arith.mulf %3, %8 : vector<4x256xf32>
    %10 = arith.truncf %9 : vector<4x256xf32> to vector<4x256xbf16>
    %cst = arith.constant 0.000000e+00 : bf16
    %11 = vector.broadcast %cst : bf16 to vector<4x17xbf16>
    %12 = vector.extract_strided_slice %6 {offsets = [0, 0], sizes = [4, 239], strides = [1, 1]} : vector<4x256xbf16> to vector<4x239xbf16>
    %13 = tpu.concatenate %11, %12 in 1 : vector<4x17xbf16>, vector<4x239xbf16> -> vector<4x256xbf16>
    %c0_6 = arith.constant 0 : index
    %c0_7 = arith.constant 0 : index
    %14 = vector.load %arg4[%c0_6, %c0_7] : memref<288x4xbf16, #tpu.memory_space<vmem>>, vector<32x4xbf16>
    %cst_8 = arith.constant dense<0.000000e+00> : vector<32x256xf32>
    %15 = tpu.matmul %14, %13, %cst_8 {dimension_numbers = #tpu.dot_dimension_numbers<[1], [0], [0], [1], [0, 0, 1, 1], [], []>} : vector<32x4xbf16>, vector<4x256xbf16>, vector<32x256xf32> -> vector<32x256xf32>
    %cst_9 = arith.constant 0.000000e+00 : bf16
    %16 = vector.broadcast %cst_9 : bf16 to vector<4x16xbf16>
    %17 = vector.extract_strided_slice %7 {offsets = [0, 0], sizes = [4, 240], strides = [1, 1]} : vector<4x256xbf16> to vector<4x240xbf16>
    %18 = tpu.concatenate %16, %17 in 1 : vector<4x16xbf16>, vector<4x240xbf16> -> vector<4x256xbf16>
    %c32 = arith.constant 32 : index
    %c0_10 = arith.constant 0 : index
    %19 = vector.load %arg4[%c32, %c0_10] : memref<288x4xbf16, #tpu.memory_space<vmem>>, vector<32x4xbf16>
    %cst_11 = arith.constant dense<0.000000e+00> : vector<32x256xf32>
    %20 = tpu.matmul %19, %18, %cst_11 {dimension_numbers = #tpu.dot_dimension_numbers<[1], [0], [0], [1], [0, 0, 1, 1], [], []>} : vector<32x4xbf16>, vector<4x256xbf16>, vector<32x256xf32> -> vector<32x256xf32>
    %21 = arith.addf %15, %20 : vector<32x256xf32>
    %cst_12 = arith.constant 0.000000e+00 : bf16
    %22 = vector.broadcast %cst_12 : bf16 to vector<4x15xbf16>
    %23 = vector.extract_strided_slice %10 {offsets = [0, 0], sizes = [4, 241], strides = [1, 1]} : vector<4x256xbf16> to vector<4x241xbf16>
    %24 = tpu.concatenate %22, %23 in 1 : vector<4x15xbf16>, vector<4x241xbf16> -> vector<4x256xbf16>
    %c64 = arith.constant 64 : index
    %c0_13 = arith.constant 0 : index
    %25 = vector.load %arg4[%c64, %c0_13] : memref<288x4xbf16, #tpu.memory_space<vmem>>, vector<32x4xbf16>
    %cst_14 = arith.constant dense<0.000000e+00> : vector<32x256xf32>
    %26 = tpu.matmul %25, %24, %cst_14 {dimension_numbers = #tpu.dot_dimension_numbers<[1], [0], [0], [1], [0, 0, 1, 1], [], []>} : vector<32x4xbf16>, vector<4x256xbf16>, vector<32x256xf32> -> vector<32x256xf32>
    %27 = arith.addf %21, %26 : vector<32x256xf32>
    %cst_15 = arith.constant 0.000000e+00 : bf16
    %28 = vector.broadcast %cst_15 : bf16 to vector<4x1xbf16>
    %29 = vector.extract_strided_slice %6 {offsets = [0, 0], sizes = [4, 255], strides = [1, 1]} : vector<4x256xbf16> to vector<4x255xbf16>
    %30 = tpu.concatenate %28, %29 in 1 : vector<4x1xbf16>, vector<4x255xbf16> -> vector<4x256xbf16>
    %c96 = arith.constant 96 : index
    %c0_16 = arith.constant 0 : index
    %31 = vector.load %arg4[%c96, %c0_16] : memref<288x4xbf16, #tpu.memory_space<vmem>>, vector<32x4xbf16>
    %cst_17 = arith.constant dense<0.000000e+00> : vector<32x256xf32>
    %32 = tpu.matmul %31, %30, %cst_17 {dimension_numbers = #tpu.dot_dimension_numbers<[1], [0], [0], [1], [0, 0, 1, 1], [], []>} : vector<32x4xbf16>, vector<4x256xbf16>, vector<32x256xf32> -> vector<32x256xf32>
    %33 = arith.addf %27, %32 : vector<32x256xf32>
    %c128 = arith.constant 128 : index
    %c0_18 = arith.constant 0 : index
    %34 = vector.load %arg4[%c128, %c0_18] : memref<288x4xbf16, #tpu.memory_space<vmem>>, vector<32x4xbf16>
    %cst_19 = arith.constant dense<0.000000e+00> : vector<32x256xf32>
    %35 = tpu.matmul %34, %7, %cst_19 {dimension_numbers = #tpu.dot_dimension_numbers<[1], [0], [0], [1], [0, 0, 1, 1], [], []>} : vector<32x4xbf16>, vector<4x256xbf16>, vector<32x256xf32> -> vector<32x256xf32>
    %36 = arith.addf %33, %35 : vector<32x256xf32>
    %cst_20 = arith.constant 0.000000e+00 : bf16
    %37 = vector.broadcast %cst_20 : bf16 to vector<4x1xbf16>
    %38 = vector.extract_strided_slice %10 {offsets = [0, 1], sizes = [4, 255], strides = [1, 1]} : vector<4x256xbf16> to vector<4x255xbf16>
    %39 = tpu.concatenate %38, %37 in 1 : vector<4x255xbf16>, vector<4x1xbf16> -> vector<4x256xbf16>
    %c160 = arith.constant 160 : index
    %c0_21 = arith.constant 0 : index
    %40 = vector.load %arg4[%c160, %c0_21] : memref<288x4xbf16, #tpu.memory_space<vmem>>, vector<32x4xbf16>
    %cst_22 = arith.constant dense<0.000000e+00> : vector<32x256xf32>
    %41 = tpu.matmul %40, %39, %cst_22 {dimension_numbers = #tpu.dot_dimension_numbers<[1], [0], [0], [1], [0, 0, 1, 1], [], []>} : vector<32x4xbf16>, vector<4x256xbf16>, vector<32x256xf32> -> vector<32x256xf32>
    %42 = arith.addf %36, %41 : vector<32x256xf32>
    %cst_23 = arith.constant 0.000000e+00 : bf16
    %43 = vector.broadcast %cst_23 : bf16 to vector<4x15xbf16>
    %44 = vector.extract_strided_slice %6 {offsets = [0, 15], sizes = [4, 241], strides = [1, 1]} : vector<4x256xbf16> to vector<4x241xbf16>
    %45 = tpu.concatenate %44, %43 in 1 : vector<4x241xbf16>, vector<4x15xbf16> -> vector<4x256xbf16>
    %c192 = arith.constant 192 : index
    %c0_24 = arith.constant 0 : index
    %46 = vector.load %arg4[%c192, %c0_24] : memref<288x4xbf16, #tpu.memory_space<vmem>>, vector<32x4xbf16>
    %cst_25 = arith.constant dense<0.000000e+00> : vector<32x256xf32>
    %47 = tpu.matmul %46, %45, %cst_25 {dimension_numbers = #tpu.dot_dimension_numbers<[1], [0], [0], [1], [0, 0, 1, 1], [], []>} : vector<32x4xbf16>, vector<4x256xbf16>, vector<32x256xf32> -> vector<32x256xf32>
    %48 = arith.addf %42, %47 : vector<32x256xf32>
    %cst_26 = arith.constant 0.000000e+00 : bf16
    %49 = vector.broadcast %cst_26 : bf16 to vector<4x16xbf16>
    %50 = vector.extract_strided_slice %7 {offsets = [0, 16], sizes = [4, 240], strides = [1, 1]} : vector<4x256xbf16> to vector<4x240xbf16>
    %51 = tpu.concatenate %50, %49 in 1 : vector<4x240xbf16>, vector<4x16xbf16> -> vector<4x256xbf16>
    %c224 = arith.constant 224 : index
    %c0_27 = arith.constant 0 : index
    %52 = vector.load %arg4[%c224, %c0_27] : memref<288x4xbf16, #tpu.memory_space<vmem>>, vector<32x4xbf16>
    %cst_28 = arith.constant dense<0.000000e+00> : vector<32x256xf32>
    %53 = tpu.matmul %52, %51, %cst_28 {dimension_numbers = #tpu.dot_dimension_numbers<[1], [0], [0], [1], [0, 0, 1, 1], [], []>} : vector<32x4xbf16>, vector<4x256xbf16>, vector<32x256xf32> -> vector<32x256xf32>
    %54 = arith.addf %48, %53 : vector<32x256xf32>
    %cst_29 = arith.constant 0.000000e+00 : bf16
    %55 = vector.broadcast %cst_29 : bf16 to vector<4x17xbf16>
    %56 = vector.extract_strided_slice %10 {offsets = [0, 17], sizes = [4, 239], strides = [1, 1]} : vector<4x256xbf16> to vector<4x239xbf16>
    %57 = tpu.concatenate %56, %55 in 1 : vector<4x239xbf16>, vector<4x17xbf16> -> vector<4x256xbf16>
    %c256 = arith.constant 256 : index
    %c0_30 = arith.constant 0 : index
    %58 = vector.load %arg4[%c256, %c0_30] : memref<288x4xbf16, #tpu.memory_space<vmem>>, vector<32x4xbf16>
    %cst_31 = arith.constant dense<0.000000e+00> : vector<32x256xf32>
    %59 = tpu.matmul %58, %57, %cst_31 {dimension_numbers = #tpu.dot_dimension_numbers<[1], [0], [0], [1], [0, 0, 1, 1], [], []>} : vector<32x4xbf16>, vector<4x256xbf16>, vector<32x256xf32> -> vector<32x256xf32>
    %60 = arith.addf %54, %59 : vector<32x256xf32>
    %c0_32 = arith.constant 0 : index
    %c0_33 = arith.constant 0 : index
    %61 = vector.load %arg5[%c0_32, %c0_33] : memref<32x1xf32, #tpu.memory_space<vmem>>, vector<32x1xf32>
    %62 = vector.broadcast %61 : vector<32x1xf32> to vector<32x256xf32>
    %63 = arith.addf %60, %62 : vector<32x256xf32>
    %cst_34 = arith.constant 0.000000e+00 : f32
    %64 = vector.broadcast %cst_34 : f32 to vector<32x256xf32>
    %65 = arith.maximumf %63, %64 : vector<32x256xf32>
    %66 = vector.broadcast %0 : vector<1x256xf32> to vector<32x256xf32>
    %67 = arith.mulf %65, %66 : vector<32x256xf32>
    %68 = arith.truncf %67 : vector<32x256xf32> to vector<32x256xbf16>
    %69 = arith.truncf %65 : vector<32x256xf32> to vector<32x256xbf16>
    %70 = vector.broadcast %1 : vector<1x256xf32> to vector<32x256xf32>
    %71 = arith.mulf %65, %70 : vector<32x256xf32>
    %72 = arith.truncf %71 : vector<32x256xf32> to vector<32x256xbf16>
    %cst_35 = arith.constant 0.000000e+00 : bf16
    %73 = vector.broadcast %cst_35 : bf16 to vector<32x17xbf16>
    %74 = vector.extract_strided_slice %68 {offsets = [0, 0], sizes = [32, 239], strides = [1, 1]} : vector<32x256xbf16> to vector<32x239xbf16>
    %75 = tpu.concatenate %73, %74 in 1 : vector<32x17xbf16>, vector<32x239xbf16> -> vector<32x256xbf16>
    %c0_36 = arith.constant 0 : index
    %c0_37 = arith.constant 0 : index
    %76 = vector.load %arg6[%c0_36, %c0_37] : memref<288x32xbf16, #tpu.memory_space<vmem>>, vector<32x32xbf16>
    %cst_38 = arith.constant dense<0.000000e+00> : vector<32x256xf32>
    %77 = tpu.matmul %76, %75, %cst_38 {dimension_numbers = #tpu.dot_dimension_numbers<[1], [0], [0], [1], [0, 0, 1, 1], [], []>} : vector<32x32xbf16>, vector<32x256xbf16>, vector<32x256xf32> -> vector<32x256xf32>
    %cst_39 = arith.constant 0.000000e+00 : bf16
    %78 = vector.broadcast %cst_39 : bf16 to vector<32x16xbf16>
    %79 = vector.extract_strided_slice %69 {offsets = [0, 0], sizes = [32, 240], strides = [1, 1]} : vector<32x256xbf16> to vector<32x240xbf16>
    %80 = tpu.concatenate %78, %79 in 1 : vector<32x16xbf16>, vector<32x240xbf16> -> vector<32x256xbf16>
    %c32_40 = arith.constant 32 : index
    %c0_41 = arith.constant 0 : index
    %81 = vector.load %arg6[%c32_40, %c0_41] : memref<288x32xbf16, #tpu.memory_space<vmem>>, vector<32x32xbf16>
    %cst_42 = arith.constant dense<0.000000e+00> : vector<32x256xf32>
    %82 = tpu.matmul %81, %80, %cst_42 {dimension_numbers = #tpu.dot_dimension_numbers<[1], [0], [0], [1], [0, 0, 1, 1], [], []>} : vector<32x32xbf16>, vector<32x256xbf16>, vector<32x256xf32> -> vector<32x256xf32>
    %83 = arith.addf %77, %82 : vector<32x256xf32>
    %cst_43 = arith.constant 0.000000e+00 : bf16
    %84 = vector.broadcast %cst_43 : bf16 to vector<32x15xbf16>
    %85 = vector.extract_strided_slice %72 {offsets = [0, 0], sizes = [32, 241], strides = [1, 1]} : vector<32x256xbf16> to vector<32x241xbf16>
    %86 = tpu.concatenate %84, %85 in 1 : vector<32x15xbf16>, vector<32x241xbf16> -> vector<32x256xbf16>
    %c64_44 = arith.constant 64 : index
    %c0_45 = arith.constant 0 : index
    %87 = vector.load %arg6[%c64_44, %c0_45] : memref<288x32xbf16, #tpu.memory_space<vmem>>, vector<32x32xbf16>
    %cst_46 = arith.constant dense<0.000000e+00> : vector<32x256xf32>
    %88 = tpu.matmul %87, %86, %cst_46 {dimension_numbers = #tpu.dot_dimension_numbers<[1], [0], [0], [1], [0, 0, 1, 1], [], []>} : vector<32x32xbf16>, vector<32x256xbf16>, vector<32x256xf32> -> vector<32x256xf32>
    %89 = arith.addf %83, %88 : vector<32x256xf32>
    %cst_47 = arith.constant 0.000000e+00 : bf16
    %90 = vector.broadcast %cst_47 : bf16 to vector<32x1xbf16>
    %91 = vector.extract_strided_slice %68 {offsets = [0, 0], sizes = [32, 255], strides = [1, 1]} : vector<32x256xbf16> to vector<32x255xbf16>
    %92 = tpu.concatenate %90, %91 in 1 : vector<32x1xbf16>, vector<32x255xbf16> -> vector<32x256xbf16>
    %c96_48 = arith.constant 96 : index
    %c0_49 = arith.constant 0 : index
    %93 = vector.load %arg6[%c96_48, %c0_49] : memref<288x32xbf16, #tpu.memory_space<vmem>>, vector<32x32xbf16>
    %cst_50 = arith.constant dense<0.000000e+00> : vector<32x256xf32>
    %94 = tpu.matmul %93, %92, %cst_50 {dimension_numbers = #tpu.dot_dimension_numbers<[1], [0], [0], [1], [0, 0, 1, 1], [], []>} : vector<32x32xbf16>, vector<32x256xbf16>, vector<32x256xf32> -> vector<32x256xf32>
    %95 = arith.addf %89, %94 : vector<32x256xf32>
    %c128_51 = arith.constant 128 : index
    %c0_52 = arith.constant 0 : index
    %96 = vector.load %arg6[%c128_51, %c0_52] : memref<288x32xbf16, #tpu.memory_space<vmem>>, vector<32x32xbf16>
    %cst_53 = arith.constant dense<0.000000e+00> : vector<32x256xf32>
    %97 = tpu.matmul %96, %69, %cst_53 {dimension_numbers = #tpu.dot_dimension_numbers<[1], [0], [0], [1], [0, 0, 1, 1], [], []>} : vector<32x32xbf16>, vector<32x256xbf16>, vector<32x256xf32> -> vector<32x256xf32>
    %98 = arith.addf %95, %97 : vector<32x256xf32>
    %cst_54 = arith.constant 0.000000e+00 : bf16
    %99 = vector.broadcast %cst_54 : bf16 to vector<32x1xbf16>
    %100 = vector.extract_strided_slice %72 {offsets = [0, 1], sizes = [32, 255], strides = [1, 1]} : vector<32x256xbf16> to vector<32x255xbf16>
    %101 = tpu.concatenate %100, %99 in 1 : vector<32x255xbf16>, vector<32x1xbf16> -> vector<32x256xbf16>
    %c160_55 = arith.constant 160 : index
    %c0_56 = arith.constant 0 : index
    %102 = vector.load %arg6[%c160_55, %c0_56] : memref<288x32xbf16, #tpu.memory_space<vmem>>, vector<32x32xbf16>
    %cst_57 = arith.constant dense<0.000000e+00> : vector<32x256xf32>
    %103 = tpu.matmul %102, %101, %cst_57 {dimension_numbers = #tpu.dot_dimension_numbers<[1], [0], [0], [1], [0, 0, 1, 1], [], []>} : vector<32x32xbf16>, vector<32x256xbf16>, vector<32x256xf32> -> vector<32x256xf32>
    %104 = arith.addf %98, %103 : vector<32x256xf32>
    %cst_58 = arith.constant 0.000000e+00 : bf16
    %105 = vector.broadcast %cst_58 : bf16 to vector<32x15xbf16>
    %106 = vector.extract_strided_slice %68 {offsets = [0, 15], sizes = [32, 241], strides = [1, 1]} : vector<32x256xbf16> to vector<32x241xbf16>
    %107 = tpu.concatenate %106, %105 in 1 : vector<32x241xbf16>, vector<32x15xbf16> -> vector<32x256xbf16>
    %c192_59 = arith.constant 192 : index
    %c0_60 = arith.constant 0 : index
    %108 = vector.load %arg6[%c192_59, %c0_60] : memref<288x32xbf16, #tpu.memory_space<vmem>>, vector<32x32xbf16>
    %cst_61 = arith.constant dense<0.000000e+00> : vector<32x256xf32>
    %109 = tpu.matmul %108, %107, %cst_61 {dimension_numbers = #tpu.dot_dimension_numbers<[1], [0], [0], [1], [0, 0, 1, 1], [], []>} : vector<32x32xbf16>, vector<32x256xbf16>, vector<32x256xf32> -> vector<32x256xf32>
    %110 = arith.addf %104, %109 : vector<32x256xf32>
    %cst_62 = arith.constant 0.000000e+00 : bf16
    %111 = vector.broadcast %cst_62 : bf16 to vector<32x16xbf16>
    %112 = vector.extract_strided_slice %69 {offsets = [0, 16], sizes = [32, 240], strides = [1, 1]} : vector<32x256xbf16> to vector<32x240xbf16>
    %113 = tpu.concatenate %112, %111 in 1 : vector<32x240xbf16>, vector<32x16xbf16> -> vector<32x256xbf16>
    %c224_63 = arith.constant 224 : index
    %c0_64 = arith.constant 0 : index
    %114 = vector.load %arg6[%c224_63, %c0_64] : memref<288x32xbf16, #tpu.memory_space<vmem>>, vector<32x32xbf16>
    %cst_65 = arith.constant dense<0.000000e+00> : vector<32x256xf32>
    %115 = tpu.matmul %114, %113, %cst_65 {dimension_numbers = #tpu.dot_dimension_numbers<[1], [0], [0], [1], [0, 0, 1, 1], [], []>} : vector<32x32xbf16>, vector<32x256xbf16>, vector<32x256xf32> -> vector<32x256xf32>
    %116 = arith.addf %110, %115 : vector<32x256xf32>
    %cst_66 = arith.constant 0.000000e+00 : bf16
    %117 = vector.broadcast %cst_66 : bf16 to vector<32x17xbf16>
    %118 = vector.extract_strided_slice %72 {offsets = [0, 17], sizes = [32, 239], strides = [1, 1]} : vector<32x256xbf16> to vector<32x239xbf16>
    %119 = tpu.concatenate %118, %117 in 1 : vector<32x239xbf16>, vector<32x17xbf16> -> vector<32x256xbf16>
    %c256_67 = arith.constant 256 : index
    %c0_68 = arith.constant 0 : index
    %120 = vector.load %arg6[%c256_67, %c0_68] : memref<288x32xbf16, #tpu.memory_space<vmem>>, vector<32x32xbf16>
    %cst_69 = arith.constant dense<0.000000e+00> : vector<32x256xf32>
    %121 = tpu.matmul %120, %119, %cst_69 {dimension_numbers = #tpu.dot_dimension_numbers<[1], [0], [0], [1], [0, 0, 1, 1], [], []>} : vector<32x32xbf16>, vector<32x256xbf16>, vector<32x256xf32> -> vector<32x256xf32>
    %122 = arith.addf %116, %121 : vector<32x256xf32>
    %c0_70 = arith.constant 0 : index
    %c0_71 = arith.constant 0 : index
    %123 = vector.load %arg7[%c0_70, %c0_71] : memref<32x1xf32, #tpu.memory_space<vmem>>, vector<32x1xf32>
    %124 = vector.broadcast %123 : vector<32x1xf32> to vector<32x256xf32>
    %125 = arith.addf %122, %124 : vector<32x256xf32>
    %cst_72 = arith.constant 0.000000e+00 : f32
    %126 = vector.broadcast %cst_72 : f32 to vector<32x256xf32>
    %127 = arith.maximumf %125, %126 : vector<32x256xf32>
    %c0_73 = arith.constant 0 : index
    %c0_74 = arith.constant 0 : index
    %128 = vector.load %arg8[%c0_73, %c0_74] : memref<32x32xbf16, #tpu.memory_space<vmem>>, vector<32x32xbf16>
    %129 = arith.truncf %127 : vector<32x256xf32> to vector<32x256xbf16>
    %cst_75 = arith.constant dense<0.000000e+00> : vector<32x256xf32>
    %130 = tpu.matmul %128, %129, %cst_75 {dimension_numbers = #tpu.dot_dimension_numbers<[1], [0], [0], [1], [0, 0, 1, 1], [], []>} : vector<32x32xbf16>, vector<32x256xbf16>, vector<32x256xf32> -> vector<32x256xf32>
    %c0_76 = arith.constant 0 : index
    %c0_77 = arith.constant 0 : index
    %131 = vector.load %arg9[%c0_76, %c0_77] : memref<32x1xf32, #tpu.memory_space<vmem>>, vector<32x1xf32>
    %132 = vector.broadcast %131 : vector<32x1xf32> to vector<32x256xf32>
    %133 = arith.addf %130, %132 : vector<32x256xf32>
    %c0_78 = arith.constant 0 : index
    %c0_79 = arith.constant 0 : index
    %c0_80 = arith.constant 0 : index
    %134 = vector.load %arg10[%c0_78, %c0_79, %c0_80] : memref<1x32x256xf32, #tpu.memory_space<vmem>>, vector<1x32x256xf32>
    %135 = vector.shape_cast %134 : vector<1x32x256xf32> to vector<32x256xf32>
    %136 = vector.shape_cast %133 : vector<32x256xf32> to vector<1x32x256xf32>
    tpu.vector_store %arg10[%c0_78, %c0_79, %c0_80], %136 {strides = array<i32>} : memref<1x32x256xf32, #tpu.memory_space<vmem>>, vector<1x32x256xf32>,
    return
  }
  func.func @transform_0(%arg0: i32) -> (i32, i32, i32) {
    %c0_i32 = arith.constant 0 : i32
    %c0_i32_0 = arith.constant 0 : i32
    %c0_i32_1 = arith.constant 0 : i32
    return %arg0, %c0_i32, %c0_i32_0 : i32, i32, i32
  }
  func.func @transform_1(%arg0: i32) -> (i32, i32) {
    %c0_i32 = arith.constant 0 : i32
    %c0_i32_0 = arith.constant 0 : i32
    %c0_i32_1 = arith.constant 0 : i32
    return %c0_i32, %c0_i32_0 : i32, i32
  }
  func.func @transform_2(%arg0: i32) -> (i32, i32) {
    %c0_i32 = arith.constant 0 : i32
    %c0_i32_0 = arith.constant 0 : i32
    %c0_i32_1 = arith.constant 0 : i32
    return %c0_i32, %c0_i32_0 : i32, i32
  }
  func.func @transform_3(%arg0: i32) -> (i32, i32) {
    %c0_i32 = arith.constant 0 : i32
    %c0_i32_0 = arith.constant 0 : i32
    %c0_i32_1 = arith.constant 0 : i32
    return %c0_i32, %c0_i32_0 : i32, i32
  }
  func.func @transform_4(%arg0: i32) -> (i32, i32) {
    %c0_i32 = arith.constant 0 : i32
    %c0_i32_0 = arith.constant 0 : i32
    %c0_i32_1 = arith.constant 0 : i32
    return %c0_i32, %c0_i32_0 : i32, i32
  }
  func.func @transform_5(%arg0: i32) -> (i32, i32) {
    %c0_i32 = arith.constant 0 : i32
    %c0_i32_0 = arith.constant 0 : i32
    %c0_i32_1 = arith.constant 0 : i32
    return %c0_i32, %c0_i32_0 : i32, i32
  }
  func.func @transform_6(%arg0: i32) -> (i32, i32) {
    %c0_i32 = arith.constant 0 : i32
    %c0_i32_0 = arith.constant 0 : i32
    %c0_i32_1 = arith.constant 0 : i32
    return %c0_i32, %c0_i32_0 : i32, i32
  }
  func.func @transform_7(%arg0: i32) -> (i32, i32) {
    %c0_i32 = arith.constant 0 : i32
    %c0_i32_0 = arith.constant 0 : i32
    %c0_i32_1 = arith.constant 0 : i32
    return %c0_i32, %c0_i32_0 : i32, i32
  }
  func.func @transform_8(%arg0: i32) -> (i32, i32) {
    %c0_i32 = arith.constant 0 : i32
    %c0_i32_0 = arith.constant 0 : i32
    %c0_i32_1 = arith.constant 0 : i32
    return %c0_i32, %c0_i32_0 : i32, i32
  }
  func.func @transform_9(%arg0: i32) -> (i32, i32, i32) {
    %c0_i32 = arith.constant 0 : i32
    %c0_i32_0 = arith.constant 0 : i32
    %c0_i32_1 = arith.constant 0 : i32
    return %arg0, %c0_i32, %c0_i32_0 : i32, i32, i32
  }
}

</mosaic_0001>

<llo_original>
// kernel: tpu_custom_call.1
$region0: #{tpu_custom_call.1}
  #allocation0 [shape = 'u32[]', space=smem, size = 0x4, offset = 0x4, fixed_abs, tag = 'smem constant byte address 0x4 - core index']
  #allocation1 [shape = 'u32[144,128]{1,0:T(1,128)}', space=vmem, size = 0x12000, scoped, tag = 'internal scratch']
  %s0 = inlined_call_operand.vmem [shape: f32[2,4,256], index: 0, kind: input, shape index: {}]
  %s1 = inlined_call_operand.vmem [shape: f32[1,256], index: 1, kind: input, shape index: {}]
  %s2 = inlined_call_operand.vmem [shape: f32[1,256], index: 2, kind: input, shape index: {}]
  %s3 = inlined_call_operand.vmem [shape: bf16[288,4], index: 3, kind: input, shape index: {}]
  %s4 = inlined_call_operand.vmem [shape: f32[32,1], index: 4, kind: input, shape index: {}]
  %s5 = inlined_call_operand.vmem [shape: bf16[288,32], index: 5, kind: input, shape index: {}]
  %s6 = inlined_call_operand.vmem [shape: f32[32,1], index: 6, kind: input, shape index: {}]
  %s7 = inlined_call_operand.vmem [shape: bf16[32,32], index: 7, kind: input, shape index: {}]
  %s8 = inlined_call_operand.vmem [shape: f32[32,1], index: 8, kind: input, shape index: {}]
  %s9 = inlined_call_operand.hbm [shape: f32[2,32,256], index: 9, kind: output, shape index: {}]
  %s10 = sld [smem:[#allocation0]]
  $region69: #{tpu_custom_call.1} parent=0
    _
  %s12 = ssub.s32 1, %s10
  %s13 = scalar_select 0, %s12, %s10
  $region1: #{tpu_custom_call.1} parent=0
    #allocation2 [shape = 'u8[65536]{0}', space=vmem, size = 0x10000, scoped, tag = 'output window, operand 0']
    #allocation3 [shape = 's32[2]{0}', space=sflag, size = 0x8, scoped, tag = 'scoped memory for tpu_custom_call.1']
    %14 = vsyncpa [#allocation3], 0
    %s15 = scalar_lea.sflag [#allocation3], 1
    %16 = vsyncpa %s15, 0
    loop: start=0, step=1, limit=4
    $region2: #{tpu_custom_call.1} parent=1 // loop_pre_header
      _
    $region3: #{tpu_custom_call.1} parent=1 // loop_header
      %s18 = sphi 0, %s22
      %p19 = scmp.ge.s32.totalorder %s18, 4
      %s28 = sphi 0, %s30
      %s31 = sphi 0, %s28
      %s32 = sphi 0, %s31
      %s48 = sphi 0, %s32
      %s52 = sphi 0, %s52
      %s54 = sphi 0, %s52
      %s55 = sphi 0, %s54
      %s69 = sphi 0, %s55
      %s73 = sphi 0, %s73
      %s75 = sphi 0, %s73
      %s76 = sphi 0, %s75
      %s90 = sphi 0, %s76
      %s94 = sphi 0, %s94
      %s96 = sphi 0, %s94
      %s97 = sphi 0, %s96
      %s111 = sphi 0, %s97
      %s115 = sphi 0, %s115
      %s117 = sphi 0, %s115
      %s118 = sphi 0, %s117
      %s132 = sphi 0, %s118
      %s136 = sphi 0, %s136
      %s138 = sphi 0, %s136
      %s139 = sphi 0, %s138
      %s153 = sphi 0, %s139
      %s157 = sphi 0, %s157
      %s159 = sphi 0, %s157
      %s160 = sphi 0, %s159
      %s174 = sphi 0, %s160
      %s178 = sphi 0, %s178
      %s180 = sphi 0, %s178
      %s181 = sphi 0, %s180
      %s195 = sphi 0, %s181
      %s199 = sphi 0, %s199
      %s201 = sphi 0, %s199
      %s202 = sphi 0, %s201
      %s216 = sphi 0, %s202
      %s222 = sphi 0, %s224
      %s225 = sphi 0, %s222
      %s226 = sphi 0, %s225
      %s242 = sphi 0, %s226
    $region4: #{tpu_custom_call.1} parent=1 // loop_header_branch
      %21 = sbr.rel (%p19) target = $region8
    $region5: #{tpu_custom_call.1} parent=1 // loop_body
      %s23 = ssub.s32 %s18, 1
      %s24 = ssub.s32 %s18, 2
      %s25 = sadd.s32 %s18, 1
      %s26 = ssub.s32 %s18, %s25
      %p27 = scmp.eq.s32.totalorder %s26, 0
      %s29 = sadd.s32 %s28, 1
      %s30 = scalar_select %p27, %s28, %s29
      %p33 = pneg %p27
      %p34 = scmp.eq.s32.totalorder %s18, 1
      %p35 = por %p33, %p34
      %p36 = scmp.ne.s32.totalorder %s28, %s31
      %p37 = scmp.eq.s32.totalorder %s18, 0
      %p38 = por %p36, %p37
      %p39 = scmp.ne.s32.totalorder %s28, %s31
      %p40 = scmp.eq.s32.totalorder %s23, 1
      %p41 = por %p39, %p40
      %p42 = scmp.ne.s32.totalorder %s31, %s32
      %p43 = scmp.eq.s32.totalorder %s23, 0
      %p44 = por %p42, %p43
      %p45 = scmp.ne.s32.totalorder %s31, %s32
      %p46 = scmp.eq.s32.totalorder %s24, 1
      %p47 = por %p45, %p46
      %p49 = scmp.ne.s32.totalorder %s32, %s48
      %p50 = scmp.eq.s32.totalorder %s24, 0
      %p51 = por %p49, %p50
      %s53 = sadd.s32 %s52, 1
      %p56 = scmp.eq.s32.totalorder %s18, 1
      %p57 = scmp.ne.s32.totalorder %s52, %s54
      %p58 = scmp.eq.s32.totalorder %s18, 0
      %p59 = por %p57, %p58
      %p60 = scmp.ne.s32.totalorder %s52, %s54
      %p61 = scmp.eq.s32.totalorder %s23, 1
      %p62 = por %p60, %p61
      %p63 = scmp.ne.s32.totalorder %s54, %s55
      %p64 = scmp.eq.s32.totalorder %s23, 0
      %p65 = por %p63, %p64
      %p66 = scmp.ne.s32.totalorder %s54, %s55
      %p67 = scmp.eq.s32.totalorder %s24, 1
      %p68 = por %p66, %p67
      %p70 = scmp.ne.s32.totalorder %s55, %s69
      %p71 = scmp.eq.s32.totalorder %s24, 0
      %p72 = por %p70, %p71
      %s74 = sadd.s32 %s73, 1
      %p77 = scmp.eq.s32.totalorder %s18, 1
      %p78 = scmp.ne.s32.totalorder %s73, %s75
      %p79 = scmp.eq.s32.totalorder %s18, 0
      %p80 = por %p78, %p79
      %p81 = scmp.ne.s32.totalorder %s73, %s75
      %p82 = scmp.eq.s32.totalorder %s23, 1
      %p83 = por %p81, %p82
      %p84 = scmp.ne.s32.totalorder %s75, %s76
      %p85 = scmp.eq.s32.totalorder %s23, 0
      %p86 = por %p84, %p85
      %p87 = scmp.ne.s32.totalorder %s75, %s76
      %p88 = scmp.eq.s32.totalorder %s24, 1
      %p89 = por %p87, %p88
      %p91 = scmp.ne.s32.totalorder %s76, %s90
      %p92 = scmp.eq.s32.totalorder %s24, 0
      %p93 = por %p91, %p92
      %s95 = sadd.s32 %s94, 1
      %p98 = scmp.eq.s32.totalorder %s18, 1
      %p99 = scmp.ne.s32.totalorder %s94, %s96
      %p100 = scmp.eq.s32.totalorder %s18, 0
      %p101 = por %p99, %p100
      %p102 = scmp.ne.s32.totalorder %s94, %s96
      %p103 = scmp.eq.s32.totalorder %s23, 1
      %p104 = por %p102, %p103
      %p105 = scmp.ne.s32.totalorder %s96, %s97
      %p106 = scmp.eq.s32.totalorder %s23, 0
      %p107 = por %p105, %p106
      %p108 = scmp.ne.s32.totalorder %s96, %s97
      %p109 = scmp.eq.s32.totalorder %s24, 1
      %p110 = por %p108, %p109
      %p112 = scmp.ne.s32.totalorder %s97, %s111
      %p113 = scmp.eq.s32.totalorder %s24, 0
      %p114 = por %p112, %p113
      %s116 = sadd.s32 %s115, 1
      %p119 = scmp.eq.s32.totalorder %s18, 1
      %p120 = scmp.ne.s32.totalorder %s115, %s117
      %p121 = scmp.eq.s32.totalorder %s18, 0
      %p122 = por %p120, %p121
      %p123 = scmp.ne.s32.totalorder %s115, %s117
      %p124 = scmp.eq.s32.totalorder %s23, 1
      %p125 = por %p123, %p124
      %p126 = scmp.ne.s32.totalorder %s117, %s118
      %p127 = scmp.eq.s32.totalorder %s23, 0
      %p128 = por %p126, %p127
      %p129 = scmp.ne.s32.totalorder %s117, %s118
      %p130 = scmp.eq.s32.totalorder %s24, 1
      %p131 = por %p129, %p130
      %p133 = scmp.ne.s32.totalorder %s118, %s132
      %p134 = scmp.eq.s32.totalorder %s24, 0
      %p135 = por %p133, %p134
      %s137 = sadd.s32 %s136, 1
      %p140 = scmp.eq.s32.totalorder %s18, 1
      %p141 = scmp.ne.s32.totalorder %s136, %s138
      %p142 = scmp.eq.s32.totalorder %s18, 0
      %p143 = por %p141, %p142
      %p144 = scmp.ne.s32.totalorder %s136, %s138
      %p145 = scmp.eq.s32.totalorder %s23, 1
      %p146 = por %p144, %p145
      %p147 = scmp.ne.s32.totalorder %s138, %s139
      %p148 = scmp.eq.s32.totalorder %s23, 0
      %p149 = por %p147, %p148
      %p150 = scmp.ne.s32.totalorder %s138, %s139
      %p151 = scmp.eq.s32.totalorder %s24, 1
      %p152 = por %p150, %p151
      %p154 = scmp.ne.s32.totalorder %s139, %s153
      %p155 = scmp.eq.s32.totalorder %s24, 0
      %p156 = por %p154, %p155
      %s158 = sadd.s32 %s157, 1
      %p161 = scmp.eq.s32.totalorder %s18, 1
      %p162 = scmp.ne.s32.totalorder %s157, %s159
      %p163 = scmp.eq.s32.totalorder %s18, 0
      %p164 = por %p162, %p163
      %p165 = scmp.ne.s32.totalorder %s157, %s159
      %p166 = scmp.eq.s32.totalorder %s23, 1
      %p167 = por %p165, %p166
      %p168 = scmp.ne.s32.totalorder %s159, %s160
      %p169 = scmp.eq.s32.totalorder %s23, 0
      %p170 = por %p168, %p169
      %p171 = scmp.ne.s32.totalorder %s159, %s160
      %p172 = scmp.eq.s32.totalorder %s24, 1
      %p173 = por %p171, %p172
      %p175 = scmp.ne.s32.totalorder %s160, %s174
      %p176 = scmp.eq.s32.totalorder %s24, 0
      %p177 = por %p175, %p176
      %s179 = sadd.s32 %s178, 1
      %p182 = scmp.eq.s32.totalorder %s18, 1
      %p183 = scmp.ne.s32.totalorder %s178, %s180
      %p184 = scmp.eq.s32.totalorder %s18, 0
      %p185 = por %p183, %p184
      %p186 = scmp.ne.s32.totalorder %s178, %s180
      %p187 = scmp.eq.s32.totalorder %s23, 1
      %p188 = por %p186, %p187
      %p189 = scmp.ne.s32.totalorder %s180, %s181
      %p190 = scmp.eq.s32.totalorder %s23, 0
      %p191 = por %p189, %p190
      %p192 = scmp.ne.s32.totalorder %s180, %s181
      %p193 = scmp.eq.s32.totalorder %s24, 1
      %p194 = por %p192, %p193
      %p196 = scmp.ne.s32.totalorder %s181, %s195
      %p197 = scmp.eq.s32.totalorder %s24, 0
      %p198 = por %p196, %p197
      %s200 = sadd.s32 %s199, 1
      %p203 = scmp.eq.s32.totalorder %s18, 1
      %p204 = scmp.ne.s32.totalorder %s199, %s201
      %p205 = scmp.eq.s32.totalorder %s18, 0
      %p206 = por %p204, %p205
      %p207 = scmp.ne.s32.totalorder %s199, %s201
      %p208 = scmp.eq.s32.totalorder %s23, 1
      %p209 = por %p207, %p208
      %p210 = scmp.ne.s32.totalorder %s201, %s202
      %p211 = scmp.eq.s32.totalorder %s23, 0
      %p212 = por %p210, %p211
      %p213 = scmp.ne.s32.totalorder %s201, %s202
      %p214 = scmp.eq.s32.totalorder %s24, 1
      %p215 = por %p213, %p214
      %p217 = scmp.ne.s32.totalorder %s202, %s216
      %p218 = scmp.eq.s32.totalorder %s24, 0
      %p219 = por %p217, %p218
      %s220 = ssub.s32 %s18, %s25
      %p221 = scmp.eq.s32.totalorder %s220, 0
      %s223 = sadd.s32 %s222, 1
      %s224 = scalar_select %p221, %s222, %s223
      %p227 = pneg %p221
      %p228 = scmp.eq.s32.totalorder %s18, 1
      %p229 = por %p227, %p228
      %p230 = scmp.ne.s32.totalorder %s222, %s225
      %p231 = scmp.eq.s32.totalorder %s18, 0
      %p232 = por %p230, %p231
      %p233 = scmp.ne.s32.totalorder %s222, %s225
      %p234 = scmp.eq.s32.totalorder %s23, 1
      %p235 = por %p233, %p234
      %p236 = scmp.ne.s32.totalorder %s225, %s226
      %p237 = scmp.eq.s32.totalorder %s23, 0
      %p238 = por %p236, %p237
      %p239 = scmp.ne.s32.totalorder %s225, %s226
      %p240 = scmp.eq.s32.totalorder %s24, 1
      %p241 = por %p239, %p240
      %p243 = scmp.ne.s32.totalorder %s226, %s242
      %p244 = scmp.eq.s32.totalorder %s24, 0
      %p245 = por %p243, %p244
      %p246 = scmp.le.s32.totalorder 1, %s18
      %p247 = scmp.lt.s32.totalorder %s18, 3
      %p248 = pnand %p246, %p247
      %p249 = pneg %p248
      // Predicated region
      $region9: #{tpu_custom_call.1} parent=5 // pred_check
        _
      $region10: #{tpu_custom_call.1} parent=5 // pred_check_branch
        %251 = sbr.rel (%p248) target = $region12
      $region11: #{tpu_custom_call.1} parent=5 // pred_region
        %s252 = ssub.s32 %s18, 1
        // Predicated region
        $region13: #{tpu_custom_call.1} parent=11 // pred_check
          %p253 = pneg %p65
        $region14: #{tpu_custom_call.1} parent=11 // pred_check_branch
          %255 = sbr.rel (%p253) target = $region16
        $region15: #{tpu_custom_call.1} parent=11 // pred_region
          _
        $region16: #{tpu_custom_call.1} parent=11 // pred_fallthru
          _
        // Predicated region
        $region17: #{tpu_custom_call.1} parent=11 // pred_check
          %p256 = pneg %p86
        $region18: #{tpu_custom_call.1} parent=11 // pred_check_branch
          %258 = sbr.rel (%p256) target = $region20
        $region19: #{tpu_custom_call.1} parent=11 // pred_region
          _
        $region20: #{tpu_custom_call.1} parent=11 // pred_fallthru
          _
        // Predicated region
        $region21: #{tpu_custom_call.1} parent=11 // pred_check
          %p259 = pneg %p107
        $region22: #{tpu_custom_call.1} parent=11 // pred_check_branch
          %261 = sbr.rel (%p259) target = $region24
        $region23: #{tpu_custom_call.1} parent=11 // pred_region
          _
        $region24: #{tpu_custom_call.1} parent=11 // pred_fallthru
          _
        // Predicated region
        $region25: #{tpu_custom_call.1} parent=11 // pred_check
          %p262 = pneg %p128
        $region26: #{tpu_custom_call.1} parent=11 // pred_check_branch
          %264 = sbr.rel (%p262) target = $region28
        $region27: #{tpu_custom_call.1} parent=11 // pred_region
          _
        $region28: #{tpu_custom_call.1} parent=11 // pred_fallthru
          _
        // Predicated region
        $region29: #{tpu_custom_call.1} parent=11 // pred_check
          %p265 = pneg %p149
        $region30: #{tpu_custom_call.1} parent=11 // pred_check_branch
          %267 = sbr.rel (%p265) target = $region32
        $region31: #{tpu_custom_call.1} parent=11 // pred_region
          _
        $region32: #{tpu_custom_call.1} parent=11 // pred_fallthru
          _
        // Predicated region
        $region33: #{tpu_custom_call.1} parent=11 // pred_check
          %p268 = pneg %p170
        $region34: #{tpu_custom_call.1} parent=11 // pred_check_branch
          %270 = sbr.rel (%p268) target = $region36
        $region35: #{tpu_custom_call.1} parent=11 // pred_region
          _
        $region36: #{tpu_custom_call.1} parent=11 // pred_fallthru
          _
        // Predicated region
        $region37: #{tpu_custom_call.1} parent=11 // pred_check
          %p271 = pneg %p191
        $region38: #{tpu_custom_call.1} parent=11 // pred_check_branch
          %273 = sbr.rel (%p271) target = $region40
        $region39: #{tpu_custom_call.1} parent=11 // pred_region
          _
        $region40: #{tpu_custom_call.1} parent=11 // pred_fallthru
          _
        // Predicated region
        $region41: #{tpu_custom_call.1} parent=11 // pred_check
          %p274 = pneg %p212
        $region42: #{tpu_custom_call.1} parent=11 // pred_check_branch
          %276 = sbr.rel (%p274) target = $region44
        $region43: #{tpu_custom_call.1} parent=11 // pred_region
          _
        $region44: #{tpu_custom_call.1} parent=11 // pred_fallthru
          _
      $region12: #{tpu_custom_call.1} parent=5 // pred_fallthru
        _
      %p277 = scmp.lt.s32.totalorder %s18, 2
      // Predicated region
      $region45: #{tpu_custom_call.1} parent=5 // pred_check
        %p278 = pneg %p277
      $region46: #{tpu_custom_call.1} parent=5 // pred_check_branch
        %280 = sbr.rel (%p278) target = $region48
      $region47: #{tpu_custom_call.1} parent=5 // pred_region
        // Predicated region
        $region49: #{tpu_custom_call.1} parent=47 // pred_check
          %p281 = pneg %p38
        $region50: #{tpu_custom_call.1} parent=47 // pred_check_branch
          %283 = sbr.rel (%p281) target = $region52
        $region51: #{tpu_custom_call.1} parent=47 // pred_region
          %p284 = scmp.lt.s32.totalorder %s18, 1
          %s285 = scalar_select %p284, %s18, 1
          %s286 = smul.addr %s285, 2
          %s287 = smul.addr %s286, 4
          %s288 = scalar_lea.vmem %s0, %s287
        $region52: #{tpu_custom_call.1} parent=47 // pred_fallthru
          _
      $region48: #{tpu_custom_call.1} parent=5 // pred_fallthru
        _
      %p289 = scmp.le.s32.totalorder 1, %s18
      %p290 = scmp.lt.s32.totalorder %s18, 3
      %p291 = pnand %p289, %p290
      %p292 = pneg %p291
      // Predicated region
      $region53: #{tpu_custom_call.1} parent=5 // pred_check
        _
      $region54: #{tpu_custom_call.1} parent=5 // pred_check_branch
        %294 = sbr.rel (%p291) target = $region56
      $region55: #{tpu_custom_call.1} parent=5 // pred_region
        %s295 = ssub.s32 %s18, 1
        %p296 = scmp.lt.s32.totalorder %s23, 1
        %s297 = scalar_select %p296, %s23, 1
        %s298 = smul.addr %s297, 2
        %s299 = smul.addr %s298, 4
        %s300 = scalar_lea.vmem %s0, %s299
        %p301 = pneg %p44
        %p302 = pneg %p41
        %p303 = pneg %p65
        %p304 = pneg %p62
        %p305 = pneg %p86
        %p306 = pneg %p83
        %p307 = pneg %p107
        %p308 = pneg %p104
        %p309 = pneg %p128
        %p310 = pneg %p125
        %p311 = pneg %p149
        %p312 = pneg %p146
        %p313 = pneg %p170
        %p314 = pneg %p167
        %p315 = pneg %p191
        %p316 = pneg %p188
        %p317 = pneg %p212
        %p318 = pneg %p209
        %p319 = pneg %p238
        %p320 = pneg %p235
        %s321 = sand.u32 %s225, 1
        %s322 = scalar_lea.sflag [#allocation3], %s321
        %s323 = sand.u32 %s225, 1
        %s324 = smul.addr %s323, 64
        %s325 = scalar_lea.vmem [#allocation2], %s324
        %p326 = scmp.lt.s32.totalorder %s23, 1
        %s327 = scalar_select %p326, %s23, 1
        %s328 = smul.addr %s327, 2
        %s329 = smul.addr %s328, 4
        %s330 = scalar_lea.vmem %s0, %s329
        %v332 = vld [vmem:[%s1] sm:$0x3]
        %v333 = vld [vmem:[%s2] sm:$0x3]
        %v334 = vld [vmem:[%s330] sm:$0xff]
        %v336 = vlaneseq
        %v337 = vshrl.u32 %v336, 7
        %v338 = vsub.s32 0, %v337
        %v339 = vrot.slane %v332, %v338
        %v340 = vlaneseq
        %v341 = vshrl.u32 %v340, 7
        %v342 = vsub.s32 1, %v341
        %v343 = vrot.slane %v332, %v342
        %v344 = vcombine.low %v339, %v343
        %v346 = vmul.f32 %v334, %v344
        %v348 = vcombine.high %v346, %v346
        %v350 = vpack.c.bf16 %v346, %v346
        %v351 = vpack.c.bf16 %v348, %v348
        %v353 = vcombine.high %v334, %v334
        %v355 = vpack.c.bf16 %v334, %v334
        %v356 = vpack.c.bf16 %v353, %v353
        %v358 = vlaneseq
        %v359 = vshrl.u32 %v358, 7
        %v360 = vsub.s32 0, %v359
        %v361 = vrot.slane %v333, %v360
        %v362 = vlaneseq
        %v363 = vshrl.u32 %v362, 7
        %v364 = vsub.s32 1, %v363
        %v365 = vrot.slane %v333, %v364
        %v366 = vcombine.low %v361, %v365
        %v368 = vmul.f32 %v334, %v366
        %v370 = vcombine.high %v368, %v368
        %v372 = vpack.c.bf16 %v368, %v368
        %v373 = vpack.c.bf16 %v370, %v370
        %376 = vrot.lane.b32.xlu0 %v350, 17
        %v377 = vpop.permute.xlu0 %376
        %378 = vrot.lane.b32.xlu0 %v351, 17
        %v379 = vpop.permute.xlu0 %378
        %vm380 = vcmask 138240
        %v381 = vsel %vm380, %v377, %v379
        %vm382 = vcmask 138240
        %v385 = vsel %vm382, 0, %v377
        %v386 = vld [vmem:[%s3] sm:$0xf]
        %v387 = vld [vmem:[%s3 + $0x4] sm:$0xf]
        %v388 = vld [vmem:[%s3 + $0x8] sm:$0xf]
        %v389 = vld [vmem:[%s3 + $0xc] sm:$0xf]
        %392 = vrot.lane.b32.xlu0 %v355, 16
        %v393 = vpop.permute.xlu0 %392
        %394 = vrot.lane.b32.xlu0 %v356, 16
        %v395 = vpop.permute.xlu0 %394
        %vm396 = vcmask 130048
        %v397 = vsel %vm396, %v393, %v395
        %vm398 = vcmask 130048
        %v400 = vsel %vm398, 0, %v393
        %v401 = vld [vmem:[%s3 + $0x10] sm:$0xf]
        %v402 = vld [vmem:[%s3 + $0x14] sm:$0xf]
        %v403 = vld [vmem:[%s3 + $0x18] sm:$0xf]
        %v404 = vld [vmem:[%s3 + $0x1c] sm:$0xf]
        %v409 = vunpack.c.l.b16 %v401
        %v410 = vunpack.c.l.b16 %v402
        %v411 = vunpack.c.l.b16 %v403
        %v412 = vunpack.c.l.b16 %v404
        %v413 = vpack.c.b16 %v410, %v409
        %v414 = vpack.c.b16 %v412, %v411
        %vm415 = vcmask 31744
        %v417 = vsel %vm415, %v413, 0
        %v420 = vsel %vm415, %v414, 0
        %vm422 = vcmask 1041408
        %v423 = vsel %vm422, %v400, 0
        %v426 = vsel %vm422, %v397, 0
        %428 = vmatprep.subr.bf16.mxu0 %v426
        %429 = vmatpush1.bf16.msra.mxu0 %v423
        %430 = vmatprep.subr.bf16.mxu0 0
        %431 = vmatpush1.bf16.msra.mxu0 0
        %432 = vmatprep.subr.bf16.mxu0 0
        %433 = vmatpush1.bf16.msra.mxu0 0
        %434 = vmatprep.subr.bf16.mxu0 0
        %435 = vmatpush1.bf16.msra.mxu0 0
        %436 = vmatprep.subr.bf16.mxu0 0
        %437 = vmatpush1.bf16.msra.mxu0 0
        %438 = vmatprep.subr.bf16.mxu0 0
        %439 = vmatpush1.bf16.msra.mxu0 0
        %440 = vmatprep.subr.bf16.mxu0 0
        %441 = vmatpush1.bf16.msra.mxu0 0
        %442 = vmatprep.subr.bf16.mxu0 0
        %443 = vmatpush1.bf16.msra.mxu0 0
        %444 = vmatprep.subr.bf16.mxu0 0
        %445 = vmatpush1.bf16.msra.mxu0 0
        %446 = vmatprep.subr.bf16.mxu0 0
        %447 = vmatpush1.bf16.msra.mxu0 0
        %448 = vmatprep.subr.bf16.mxu0 0
        %449 = vmatpush1.bf16.msra.mxu0 0
        %450 = vmatprep.subr.bf16.mxu0 0
        %451 = vmatpush1.bf16.msra.mxu0 0
        %452 = vmatprep.subr.bf16.mxu0 0
        %453 = vmatpush1.bf16.msra.mxu0 0
        %454 = vmatprep.subr.bf16.mxu0 0
        %455 = vmatpush1.bf16.msra.mxu0 0
        %456 = vmatprep.subr.bf16.mxu0 0
        %457 = vmatpush1.bf16.msra.mxu0 0
        %458 = vmatprep.subr.bf16.mxu0 0
        %459 = vmatpush1.bf16.msra.mxu0 0
        %460 = vmatprep.mubr.bf16.mxu0 0
        %461 = vmatmul.mubr.bf16.gmra.mrb[0].mxu0 %v417
        %v462 = vpop.f32.mrb[0].mxu0
        %v463 = vadd.f32 0.0, %v462
        %v464 = vpop.f32.mrb[0].mxu0
        %v465 = vadd.f32 0.0, %v464
        %v466 = vpop.f32.mrb[0].mxu0
        %v467 = vadd.f32 0.0, %v466
        %v468 = vpop.f32.mrb[0].mxu0
        %v469 = vadd.f32 0.0, %v468
        %470 = vmatprep.mubr.bf16.mxu0 0
        %471 = vmatmul.mubr.bf16.gmra.mrb[0].mxu0 %v420
        %v472 = vpop.f32.mrb[0].mxu0
        %v473 = vadd.f32 0.0, %v472
        %v474 = vpop.f32.mrb[0].mxu0
        %v475 = vadd.f32 0.0, %v474
        %v476 = vpop.f32.mrb[0].mxu0
        %v477 = vadd.f32 0.0, %v476
        %v478 = vpop.f32.mrb[0].mxu0
        %v479 = vadd.f32 0.0, %v478
        %480 = vdwg.mxu0
        %v485 = vunpack.c.l.b16 %v386
        %v486 = vunpack.c.l.b16 %v387
        %v487 = vunpack.c.l.b16 %v388
        %v488 = vunpack.c.l.b16 %v389
        %v489 = vpack.c.b16 %v486, %v485
        %v490 = vpack.c.b16 %v488, %v487
        %v492 = vsel %vm415, %v489, 0
        %v495 = vsel %vm415, %v490, 0
        %v497 = vsel %vm422, %v385, 0
        %v500 = vsel %vm422, %v381, 0
        %502 = vmatprep.subr.bf16.mxu0 %v500
        %503 = vmatpush1.bf16.msra.mxu0 %v497
        %504 = vmatprep.subr.bf16.mxu0 0
        %505 = vmatpush1.bf16.msra.mxu0 0
        %506 = vmatprep.subr.bf16.mxu0 0
        %507 = vmatpush1.bf16.msra.mxu0 0
        %508 = vmatprep.subr.bf16.mxu0 0
        %509 = vmatpush1.bf16.msra.mxu0 0
        %510 = vmatprep.subr.bf16.mxu0 0
        %511 = vmatpush1.bf16.msra.mxu0 0
        %512 = vmatprep.subr.bf16.mxu0 0
        %513 = vmatpush1.bf16.msra.mxu0 0
        %514 = vmatprep.subr.bf16.mxu0 0
        %515 = vmatpush1.bf16.msra.mxu0 0
        %516 = vmatprep.subr.bf16.mxu0 0
        %517 = vmatpush1.bf16.msra.mxu0 0
        %518 = vmatprep.subr.bf16.mxu0 0
        %519 = vmatpush1.bf16.msra.mxu0 0
        %520 = vmatprep.subr.bf16.mxu0 0
        %521 = vmatpush1.bf16.msra.mxu0 0
        %522 = vmatprep.subr.bf16.mxu0 0
        %523 = vmatpush1.bf16.msra.mxu0 0
        %524 = vmatprep.subr.bf16.mxu0 0
        %525 = vmatpush1.bf16.msra.mxu0 0
        %526 = vmatprep.subr.bf16.mxu0 0
        %527 = vmatpush1.bf16.msra.mxu0 0
        %528 = vmatprep.subr.bf16.mxu0 0
        %529 = vmatpush1.bf16.msra.mxu0 0
        %530 = vmatprep.subr.bf16.mxu0 0
        %531 = vmatpush1.bf16.msra.mxu0 0
        %532 = vmatprep.subr.bf16.mxu0 0
        %533 = vmatpush1.bf16.msra.mxu0 0
        %534 = vmatprep.mubr.bf16.mxu0 0
        %535 = vmatmul.mubr.bf16.gmra.mrb[0].mxu0 %v492
        %v536 = vpop.f32.mrb[0].mxu0
        %v537 = vadd.f32 %v463, %v536
        %v538 = vpop.f32.mrb[0].mxu0
        %v539 = vadd.f32 %v465, %v538
        %v540 = vpop.f32.mrb[0].mxu0
        %v541 = vadd.f32 %v467, %v540
        %v542 = vpop.f32.mrb[0].mxu0
        %v543 = vadd.f32 %v469, %v542
        %544 = vmatprep.mubr.bf16.mxu0 0
        %545 = vmatmul.mubr.bf16.gmra.mrb[0].mxu0 %v495
        %v546 = vpop.f32.mrb[0].mxu0
        %v547 = vadd.f32 %v473, %v546
        %v548 = vpop.f32.mrb[0].mxu0
        %v549 = vadd.f32 %v475, %v548
        %v550 = vpop.f32.mrb[0].mxu0
        %v551 = vadd.f32 %v477, %v550
        %v552 = vpop.f32.mrb[0].mxu0
        %v553 = vadd.f32 %v479, %v552
        %554 = vdwg.mxu0
        %557 = vrot.lane.b32.xlu0 %v372, 15
        %v558 = vpop.permute.xlu0 %557
        %559 = vrot.lane.b32.xlu0 %v373, 15
        %v560 = vpop.permute.xlu0 %559
        %vm561 = vcmask 121856
        %v562 = vsel %vm561, %v558, %v560
        %vm563 = vcmask 121856
        %v565 = vsel %vm563, 0, %v558
        %v566 = vld [vmem:[%s3 + $0x20] sm:$0xf]
        %v567 = vld [vmem:[%s3 + $0x24] sm:$0xf]
        %v568 = vld [vmem:[%s3 + $0x28] sm:$0xf]
        %v569 = vld [vmem:[%s3 + $0x2c] sm:$0xf]
        %v574 = vunpack.c.l.b16 %v566
        %v575 = vunpack.c.l.b16 %v567
        %v576 = vunpack.c.l.b16 %v568
        %v577 = vunpack.c.l.b16 %v569
        %v578 = vpack.c.b16 %v575, %v574
        %v579 = vpack.c.b16 %v577, %v576
        %v581 = vsel %vm415, %v578, 0
        %v584 = vsel %vm415, %v579, 0
        %v586 = vsel %vm422, %v565, 0
        %v589 = vsel %vm422, %v562, 0
        %591 = vmatprep.subr.bf16.mxu0 %v589
        %592 = vmatpush1.bf16.msra.mxu0 %v586
        %593 = vmatprep.subr.bf16.mxu0 0
        %594 = vmatpush1.bf16.msra.mxu0 0
        %595 = vmatprep.subr.bf16.mxu0 0
        %596 = vmatpush1.bf16.msra.mxu0 0
        %597 = vmatprep.subr.bf16.mxu0 0
        %598 = vmatpush1.bf16.msra.mxu0 0
        %599 = vmatprep.subr.bf16.mxu0 0
        %600 = vmatpush1.bf16.msra.mxu0 0
        %601 = vmatprep.subr.bf16.mxu0 0
        %602 = vmatpush1.bf16.msra.mxu0 0
        %603 = vmatprep.subr.bf16.mxu0 0
        %604 = vmatpush1.bf16.msra.mxu0 0
        %605 = vmatprep.subr.bf16.mxu0 0
        %606 = vmatpush1.bf16.msra.mxu0 0
        %607 = vmatprep.subr.bf16.mxu0 0
        %608 = vmatpush1.bf16.msra.mxu0 0
        %609 = vmatprep.subr.bf16.mxu0 0
        %610 = vmatpush1.bf16.msra.mxu0 0
        %611 = vmatprep.subr.bf16.mxu0 0
        %612 = vmatpush1.bf16.msra.mxu0 0
        %613 = vmatprep.subr.bf16.mxu0 0
        %614 = vmatpush1.bf16.msra.mxu0 0
        %615 = vmatprep.subr.bf16.mxu0 0
        %616 = vmatpush1.bf16.msra.mxu0 0
        %617 = vmatprep.subr.bf16.mxu0 0
        %618 = vmatpush1.bf16.msra.mxu0 0
        %619 = vmatprep.subr.bf16.mxu0 0
        %620 = vmatpush1.bf16.msra.mxu0 0
        %621 = vmatprep.subr.bf16.mxu0 0
        %622 = vmatpush1.bf16.msra.mxu0 0
        %623 = vmatprep.mubr.bf16.mxu0 0
        %624 = vmatmul.mubr.bf16.gmra.mrb[0].mxu0 %v581
        %v625 = vpop.f32.mrb[0].mxu0
        %v626 = vadd.f32 0.0, %v625
        %v627 = vpop.f32.mrb[0].mxu0
        %v628 = vadd.f32 0.0, %v627
        %v629 = vpop.f32.mrb[0].mxu0
        %v630 = vadd.f32 0.0, %v629
        %v631 = vpop.f32.mrb[0].mxu0
        %v632 = vadd.f32 0.0, %v631
        %633 = vmatprep.mubr.bf16.mxu0 0
        %634 = vmatmul.mubr.bf16.gmra.mrb[0].mxu0 %v584
        %v635 = vpop.f32.mrb[0].mxu0
        %v636 = vadd.f32 0.0, %v635
        %v637 = vpop.f32.mrb[0].mxu0
        %v638 = vadd.f32 0.0, %v637
        %v639 = vpop.f32.mrb[0].mxu0
        %v640 = vadd.f32 0.0, %v639
        %v641 = vpop.f32.mrb[0].mxu0
        %v642 = vadd.f32 0.0, %v641
        %643 = vdwg.mxu0
        %v644 = vadd.f32 %v537, %v626
        %v645 = vadd.f32 %v539, %v628
        %v646 = vadd.f32 %v541, %v630
        %v647 = vadd.f32 %v543, %v632
        %v648 = vadd.f32 %v547, %v636
        %v649 = vadd.f32 %v549, %v638
        %v650 = vadd.f32 %v551, %v640
        %v651 = vadd.f32 %v553, %v642
        %652 = vrot.lane.b32.xlu0 %v350, 1
        %v653 = vpop.permute.xlu0 %652
        %654 = vrot.lane.b32.xlu0 %v351, 1
        %v655 = vpop.permute.xlu0 %654
        %vm656 = vcmask 7168
        %v657 = vsel %vm656, %v653, %v655
        %vm658 = vcmask 7168
        %v660 = vsel %vm658, 0, %v653
        %v661 = vld [vmem:[%s3 + $0x30] sm:$0xf]
        %v662 = vld [vmem:[%s3 + $0x34] sm:$0xf]
        %v663 = vld [vmem:[%s3 + $0x38] sm:$0xf]
        %v664 = vld [vmem:[%s3 + $0x3c] sm:$0xf]
        %v669 = vunpack.c.l.b16 %v661
        %v670 = vunpack.c.l.b16 %v662
        %v671 = vunpack.c.l.b16 %v663
        %v672 = vunpack.c.l.b16 %v664
        %v673 = vpack.c.b16 %v670, %v669
        %v674 = vpack.c.b16 %v672, %v671
        %v676 = vsel %vm415, %v673, 0
        %v679 = vsel %vm415, %v674, 0
        %v681 = vsel %vm422, %v660, 0
        %v684 = vsel %vm422, %v657, 0
        %686 = vmatprep.subr.bf16.mxu0 %v684
        %687 = vmatpush1.bf16.msra.mxu0 %v681
        %688 = vmatprep.subr.bf16.mxu0 0
        %689 = vmatpush1.bf16.msra.mxu0 0
        %690 = vmatprep.subr.bf16.mxu0 0
        %691 = vmatpush1.bf16.msra.mxu0 0
        %692 = vmatprep.subr.bf16.mxu0 0
        %693 = vmatpush1.bf16.msra.mxu0 0
        %694 = vmatprep.subr.bf16.mxu0 0
        %695 = vmatpush1.bf16.msra.mxu0 0
        %696 = vmatprep.subr.bf16.mxu0 0
        %697 = vmatpush1.bf16.msra.mxu0 0
        %698 = vmatprep.subr.bf16.mxu0 0
        %699 = vmatpush1.bf16.msra.mxu0 0
        %700 = vmatprep.subr.bf16.mxu0 0
        %701 = vmatpush1.bf16.msra.mxu0 0
        %702 = vmatprep.subr.bf16.mxu0 0
        %703 = vmatpush1.bf16.msra.mxu0 0
        %704 = vmatprep.subr.bf16.mxu0 0
        %705 = vmatpush1.bf16.msra.mxu0 0
        %706 = vmatprep.subr.bf16.mxu0 0
        %707 = vmatpush1.bf16.msra.mxu0 0
        %708 = vmatprep.subr.bf16.mxu0 0
        %709 = vmatpush1.bf16.msra.mxu0 0
        %710 = vmatprep.subr.bf16.mxu0 0
        %711 = vmatpush1.bf16.msra.mxu0 0
        %712 = vmatprep.subr.bf16.mxu0 0
        %713 = vmatpush1.bf16.msra.mxu0 0
        %714 = vmatprep.subr.bf16.mxu0 0
        %715 = vmatpush1.bf16.msra.mxu0 0
        %716 = vmatprep.subr.bf16.mxu0 0
        %717 = vmatpush1.bf16.msra.mxu0 0
        %718 = vmatprep.mubr.bf16.mxu0 0
        %719 = vmatmul.mubr.bf16.gmra.mrb[0].mxu0 %v676
        %v720 = vpop.f32.mrb[0].mxu0
        %v721 = vadd.f32 0.0, %v720
        %v722 = vpop.f32.mrb[0].mxu0
        %v723 = vadd.f32 0.0, %v722
        %v724 = vpop.f32.mrb[0].mxu0
        %v725 = vadd.f32 0.0, %v724
        %v726 = vpop.f32.mrb[0].mxu0
        %v727 = vadd.f32 0.0, %v726
        %728 = vmatprep.mubr.bf16.mxu0 0
        %729 = vmatmul.mubr.bf16.gmra.mrb[0].mxu0 %v679
        %v730 = vpop.f32.mrb[0].mxu0
        %v731 = vadd.f32 0.0, %v730
        %v732 = vpop.f32.mrb[0].mxu0
        %v733 = vadd.f32 0.0, %v732
        %v734 = vpop.f32.mrb[0].mxu0
        %v735 = vadd.f32 0.0, %v734
        %v736 = vpop.f32.mrb[0].mxu0
        %v737 = vadd.f32 0.0, %v736
        %738 = vdwg.mxu0
        %v739 = vadd.f32 %v644, %v721
        %v740 = vadd.f32 %v645, %v723
        %v741 = vadd.f32 %v646, %v725
        %v742 = vadd.f32 %v647, %v727
        %v743 = vadd.f32 %v648, %v731
        %v744 = vadd.f32 %v649, %v733
        %v745 = vadd.f32 %v650, %v735
        %v746 = vadd.f32 %v651, %v737
        %v747 = vld [vmem:[%s3 + $0x40] sm:$0xf]
        %v748 = vld [vmem:[%s3 + $0x44] sm:$0xf]
        %v749 = vld [vmem:[%s3 + $0x48] sm:$0xf]
        %v750 = vld [vmem:[%s3 + $0x4c] sm:$0xf]
        %v755 = vunpack.c.l.b16 %v747
        %v756 = vunpack.c.l.b16 %v748
        %v757 = vunpack.c.l.b16 %v749
        %v758 = vunpack.c.l.b16 %v750
        %v759 = vpack.c.b16 %v756, %v755
        %v760 = vpack.c.b16 %v758, %v757
        %v762 = vsel %vm415, %v759, 0
        %v765 = vsel %vm415, %v760, 0
        %v768 = vsel %vm422, %v355, 0
        %v771 = vsel %vm422, %v356, 0
        %773 = vmatprep.subr.bf16.mxu0 %v771
        %774 = vmatpush1.bf16.msra.mxu0 %v768
        %775 = vmatprep.subr.bf16.mxu0 0
        %776 = vmatpush1.bf16.msra.mxu0 0
        %777 = vmatprep.subr.bf16.mxu0 0
        %778 = vmatpush1.bf16.msra.mxu0 0
        %779 = vmatprep.subr.bf16.mxu0 0
        %780 = vmatpush1.bf16.msra.mxu0 0
        %781 = vmatprep.subr.bf16.mxu0 0
        %782 = vmatpush1.bf16.msra.mxu0 0
        %783 = vmatprep.subr.bf16.mxu0 0
        %784 = vmatpush1.bf16.msra.mxu0 0
        %785 = vmatprep.subr.bf16.mxu0 0
        %786 = vmatpush1.bf16.msra.mxu0 0
        %787 = vmatprep.subr.bf16.mxu0 0
        %788 = vmatpush1.bf16.msra.mxu0 0
        %789 = vmatprep.subr.bf16.mxu0 0
        %790 = vmatpush1.bf16.msra.mxu0 0
        %791 = vmatprep.subr.bf16.mxu0 0
        %792 = vmatpush1.bf16.msra.mxu0 0
        %793 = vmatprep.subr.bf16.mxu0 0
        %794 = vmatpush1.bf16.msra.mxu0 0
        %795 = vmatprep.subr.bf16.mxu0 0
        %796 = vmatpush1.bf16.msra.mxu0 0
        %797 = vmatprep.subr.bf16.mxu0 0
        %798 = vmatpush1.bf16.msra.mxu0 0
        %799 = vmatprep.subr.bf16.mxu0 0
        %800 = vmatpush1.bf16.msra.mxu0 0
        %801 = vmatprep.subr.bf16.mxu0 0
        %802 = vmatpush1.bf16.msra.mxu0 0
        %803 = vmatprep.subr.bf16.mxu0 0
        %804 = vmatpush1.bf16.msra.mxu0 0
        %805 = vmatprep.mubr.bf16.mxu0 0
        %806 = vmatmul.mubr.bf16.gmra.mrb[0].mxu0 %v762
        %v807 = vpop.f32.mrb[0].mxu0
        %v808 = vadd.f32 0.0, %v807
        %v809 = vpop.f32.mrb[0].mxu0
        %v810 = vadd.f32 0.0, %v809
        %v811 = vpop.f32.mrb[0].mxu0
        %v812 = vadd.f32 0.0, %v811
        %v813 = vpop.f32.mrb[0].mxu0
        %v814 = vadd.f32 0.0, %v813
        %815 = vmatprep.mubr.bf16.mxu0 0
        %816 = vmatmul.mubr.bf16.gmra.mrb[0].mxu0 %v765
        %v817 = vpop.f32.mrb[0].mxu0
        %v818 = vadd.f32 0.0, %v817
        %v819 = vpop.f32.mrb[0].mxu0
        %v820 = vadd.f32 0.0, %v819
        %v821 = vpop.f32.mrb[0].mxu0
        %v822 = vadd.f32 0.0, %v821
        %v823 = vpop.f32.mrb[0].mxu0
        %v824 = vadd.f32 0.0, %v823
        %825 = vdwg.mxu0
        %v826 = vadd.f32 %v739, %v808
        %v827 = vadd.f32 %v740, %v810
        %v828 = vadd.f32 %v741, %v812
        %v829 = vadd.f32 %v742, %v814
        %v830 = vadd.f32 %v743, %v818
        %v831 = vadd.f32 %v744, %v820
        %v832 = vadd.f32 %v745, %v822
        %v833 = vadd.f32 %v746, %v824
        %834 = vrot.lane.b32.xlu0 %v372, 127
        %v835 = vpop.permute.xlu0 %834
        %836 = vrot.lane.b32.xlu0 %v373, 127
        %v837 = vpop.permute.xlu0 %836
        %vm838 = vcmask 1039360
        %v839 = vsel %vm838, %v835, %v837
        %vm840 = vcmask 1039360
        %v842 = vsel %vm840, %v837, 0
        %v843 = vld [vmem:[%s3 + $0x50] sm:$0xf]
        %v844 = vld [vmem:[%s3 + $0x54] sm:$0xf]
        %v845 = vld [vmem:[%s3 + $0x58] sm:$0xf]
        %v846 = vld [vmem:[%s3 + $0x5c] sm:$0xf]
        %v851 = vunpack.c.l.b16 %v843
        %v852 = vunpack.c.l.b16 %v844
        %v853 = vunpack.c.l.b16 %v845
        %v854 = vunpack.c.l.b16 %v846
        %v855 = vpack.c.b16 %v852, %v851
        %v856 = vpack.c.b16 %v854, %v853
        %v858 = vsel %vm415, %v855, 0
        %v861 = vsel %vm415, %v856, 0
        %v864 = vsel %vm422, %v839, 0
        %v866 = vsel %vm422, %v842, 0
        %868 = vmatprep.subr.bf16.mxu0 %v866
        %869 = vmatpush1.bf16.msra.mxu0 %v864
        %870 = vmatprep.subr.bf16.mxu0 0
        %871 = vmatpush1.bf16.msra.mxu0 0
        %872 = vmatprep.subr.bf16.mxu0 0
        %873 = vmatpush1.bf16.msra.mxu0 0
        %874 = vmatprep.subr.bf16.mxu0 0
        %875 = vmatpush1.bf16.msra.mxu0 0
        %876 = vmatprep.subr.bf16.mxu0 0
        %877 = vmatpush1.bf16.msra.mxu0 0
        %878 = vmatprep.subr.bf16.mxu0 0
        %879 = vmatpush1.bf16.msra.mxu0 0
        %880 = vmatprep.subr.bf16.mxu0 0
        %881 = vmatpush1.bf16.msra.mxu0 0
        %882 = vmatprep.subr.bf16.mxu0 0
        %883 = vmatpush1.bf16.msra.mxu0 0
        %884 = vmatprep.subr.bf16.mxu0 0
        %885 = vmatpush1.bf16.msra.mxu0 0
        %886 = vmatprep.subr.bf16.mxu0 0
        %887 = vmatpush1.bf16.msra.mxu0 0
        %888 = vmatprep.subr.bf16.mxu0 0
        %889 = vmatpush1.bf16.msra.mxu0 0
        %890 = vmatprep.subr.bf16.mxu0 0
        %891 = vmatpush1.bf16.msra.mxu0 0
        %892 = vmatprep.subr.bf16.mxu0 0
        %893 = vmatpush1.bf16.msra.mxu0 0
        %894 = vmatprep.subr.bf16.mxu0 0
        %895 = vmatpush1.bf16.msra.mxu0 0
        %896 = vmatprep.subr.bf16.mxu0 0
        %897 = vmatpush1.bf16.msra.mxu0 0
        %898 = vmatprep.subr.bf16.mxu0 0
        %899 = vmatpush1.bf16.msra.mxu0 0
        %900 = vmatprep.mubr.bf16.mxu0 0
        %901 = vmatmul.mubr.bf16.gmra.mrb[0].mxu0 %v858
        %v902 = vpop.f32.mrb[0].mxu0
        %v903 = vadd.f32 0.0, %v902
        %v904 = vpop.f32.mrb[0].mxu0
        %v905 = vadd.f32 0.0, %v904
        %v906 = vpop.f32.mrb[0].mxu0
        %v907 = vadd.f32 0.0, %v906
        %v908 = vpop.f32.mrb[0].mxu0
        %v909 = vadd.f32 0.0, %v908
        %910 = vmatprep.mubr.bf16.mxu0 0
        %911 = vmatmul.mubr.bf16.gmra.mrb[0].mxu0 %v861
        %v912 = vpop.f32.mrb[0].mxu0
        %v913 = vadd.f32 0.0, %v912
        %v914 = vpop.f32.mrb[0].mxu0
        %v915 = vadd.f32 0.0, %v914
        %v916 = vpop.f32.mrb[0].mxu0
        %v917 = vadd.f32 0.0, %v916
        %v918 = vpop.f32.mrb[0].mxu0
        %v919 = vadd.f32 0.0, %v918
        %920 = vdwg.mxu0
        %v921 = vadd.f32 %v826, %v903
        %v922 = vadd.f32 %v827, %v905
        %v923 = vadd.f32 %v828, %v907
        %v924 = vadd.f32 %v829, %v909
        %v925 = vadd.f32 %v830, %v913
        %v926 = vadd.f32 %v831, %v915
        %v927 = vadd.f32 %v832, %v917
        %v928 = vadd.f32 %v833, %v919
        %929 = vrot.lane.b32.xlu0 %v350, 113
        %v930 = vpop.permute.xlu0 %929
        %931 = vrot.lane.b32.xlu0 %v351, 113
        %v932 = vpop.permute.xlu0 %931
        %vm933 = vcmask 924672
        %v934 = vsel %vm933, %v930, %v932
        %vm935 = vcmask 924672
        %v937 = vsel %vm935, %v932, 0
        %v938 = vld [vmem:[%s3 + $0x60] sm:$0xf]
        %v939 = vld [vmem:[%s3 + $0x64] sm:$0xf]
        %v940 = vld [vmem:[%s3 + $0x68] sm:$0xf]
        %v941 = vld [vmem:[%s3 + $0x6c] sm:$0xf]
        %v946 = vunpack.c.l.b16 %v938
        %v947 = vunpack.c.l.b16 %v939
        %v948 = vunpack.c.l.b16 %v940
        %v949 = vunpack.c.l.b16 %v941
        %v950 = vpack.c.b16 %v947, %v946
        %v951 = vpack.c.b16 %v949, %v948
        %v953 = vsel %vm415, %v950, 0
        %v956 = vsel %vm415, %v951, 0
        %v959 = vsel %vm422, %v934, 0
        %v961 = vsel %vm422, %v937, 0
        %963 = vmatprep.subr.bf16.mxu0 %v961
        %964 = vmatpush1.bf16.msra.mxu0 %v959
        %965 = vmatprep.subr.bf16.mxu0 0
        %966 = vmatpush1.bf16.msra.mxu0 0
        %967 = vmatprep.subr.bf16.mxu0 0
        %968 = vmatpush1.bf16.msra.mxu0 0
        %969 = vmatprep.subr.bf16.mxu0 0
        %970 = vmatpush1.bf16.msra.mxu0 0
        %971 = vmatprep.subr.bf16.mxu0 0
        %972 = vmatpush1.bf16.msra.mxu0 0
        %973 = vmatprep.subr.bf16.mxu0 0
        %974 = vmatpush1.bf16.msra.mxu0 0
        %975 = vmatprep.subr.bf16.mxu0 0
        %976 = vmatpush1.bf16.msra.mxu0 0
        %977 = vmatprep.subr.bf16.mxu0 0
        %978 = vmatpush1.bf16.msra.mxu0 0
        %979 = vmatprep.subr.bf16.mxu0 0
        %980 = vmatpush1.bf16.msra.mxu0 0
        %981 = vmatprep.subr.bf16.mxu0 0
        %982 = vmatpush1.bf16.msra.mxu0 0
        %983 = vmatprep.subr.bf16.mxu0 0
        %984 = vmatpush1.bf16.msra.mxu0 0
        %985 = vmatprep.subr.bf16.mxu0 0
        %986 = vmatpush1.bf16.msra.mxu0 0
        %987 = vmatprep.subr.bf16.mxu0 0
        %988 = vmatpush1.bf16.msra.mxu0 0
        %989 = vmatprep.subr.bf16.mxu0 0
        %990 = vmatpush1.bf16.msra.mxu0 0
        %991 = vmatprep.subr.bf16.mxu0 0
        %992 = vmatpush1.bf16.msra.mxu0 0
        %993 = vmatprep.subr.bf16.mxu0 0
        %994 = vmatpush1.bf16.msra.mxu0 0
        %995 = vmatprep.mubr.bf16.mxu0 0
        %996 = vmatmul.mubr.bf16.gmra.mrb[0].mxu0 %v953
        %v997 = vpop.f32.mrb[0].mxu0
        %v998 = vadd.f32 0.0, %v997
        %v999 = vpop.f32.mrb[0].mxu0
        %v1000 = vadd.f32 0.0, %v999
        %v1001 = vpop.f32.mrb[0].mxu0
        %v1002 = vadd.f32 0.0, %v1001
        %v1003 = vpop.f32.mrb[0].mxu0
        %v1004 = vadd.f32 0.0, %v1003
        %1005 = vmatprep.mubr.bf16.mxu0 0
        %1006 = vmatmul.mubr.bf16.gmra.mrb[0].mxu0 %v956
        %v1007 = vpop.f32.mrb[0].mxu0
        %v1008 = vadd.f32 0.0, %v1007
        %v1009 = vpop.f32.mrb[0].mxu0
        %v1010 = vadd.f32 0.0, %v1009
        %v1011 = vpop.f32.mrb[0].mxu0
        %v1012 = vadd.f32 0.0, %v1011
        %v1013 = vpop.f32.mrb[0].mxu0
        %v1014 = vadd.f32 0.0, %v1013
        %1015 = vdwg.mxu0
        %v1016 = vadd.f32 %v921, %v998
        %v1017 = vadd.f32 %v922, %v1000
        %v1018 = vadd.f32 %v923, %v1002
        %v1019 = vadd.f32 %v924, %v1004
        %v1020 = vadd.f32 %v925, %v1008
        %v1021 = vadd.f32 %v926, %v1010
        %v1022 = vadd.f32 %v927, %v1012
        %v1023 = vadd.f32 %v928, %v1014
        %1024 = vrot.lane.b32.xlu0 %v355, 112
        %v1025 = vpop.permute.xlu0 %1024
        %1026 = vrot.lane.b32.xlu0 %v356, 112
        %v1027 = vpop.permute.xlu0 %1026
        %vm1028 = vcmask 916480
        %v1029 = vsel %vm1028, %v1025, %v1027
        %vm1030 = vcmask 916480
        %v1032 = vsel %vm1030, %v1027, 0
        %v1033 = vld [vmem:[%s3 + $0x70] sm:$0xf]
        %v1034 = vld [vmem:[%s3 + $0x74] sm:$0xf]
        %v1035 = vld [vmem:[%s3 + $0x78] sm:$0xf]
        %v1036 = vld [vmem:[%s3 + $0x7c] sm:$0xf]
        %v1041 = vunpack.c.l.b16 %v1033
        %v1042 = vunpack.c.l.b16 %v1034
        %v1043 = vunpack.c.l.b16 %v1035
        %v1044 = vunpack.c.l.b16 %v1036
        %v1045 = vpack.c.b16 %v1042, %v1041
        %v1046 = vpack.c.b16 %v1044, %v1043
        %v1048 = vsel %vm415, %v1045, 0
        %v1051 = vsel %vm415, %v1046, 0
        %v1054 = vsel %vm422, %v1029, 0
        %v1056 = vsel %vm422, %v1032, 0
        %1058 = vmatprep.subr.bf16.mxu0 %v1056
        %1059 = vmatpush1.bf16.msra.mxu0 %v1054
        %1060 = vmatprep.subr.bf16.mxu0 0
        %1061 = vmatpush1.bf16.msra.mxu0 0
        %1062 = vmatprep.subr.bf16.mxu0 0
        %1063 = vmatpush1.bf16.msra.mxu0 0
        %1064 = vmatprep.subr.bf16.mxu0 0
        %1065 = vmatpush1.bf16.msra.mxu0 0
        %1066 = vmatprep.subr.bf16.mxu0 0
        %1067 = vmatpush1.bf16.msra.mxu0 0
        %1068 = vmatprep.subr.bf16.mxu0 0
        %1069 = vmatpush1.bf16.msra.mxu0 0
        %1070 = vmatprep.subr.bf16.mxu0 0
        %1071 = vmatpush1.bf16.msra.mxu0 0
        %1072 = vmatprep.subr.bf16.mxu0 0
        %1073 = vmatpush1.bf16.msra.mxu0 0
        %1074 = vmatprep.subr.bf16.mxu0 0
        %1075 = vmatpush1.bf16.msra.mxu0 0
        %1076 = vmatprep.subr.bf16.mxu0 0
        %1077 = vmatpush1.bf16.msra.mxu0 0
        %1078 = vmatprep.subr.bf16.mxu0 0
        %1079 = vmatpush1.bf16.msra.mxu0 0
        %1080 = vmatprep.subr.bf16.mxu0 0
        %1081 = vmatpush1.bf16.msra.mxu0 0
        %1082 = vmatprep.subr.bf16.mxu0 0
        %1083 = vmatpush1.bf16.msra.mxu0 0
        %1084 = vmatprep.subr.bf16.mxu0 0
        %1085 = vmatpush1.bf16.msra.mxu0 0
        %1086 = vmatprep.subr.bf16.mxu0 0
        %1087 = vmatpush1.bf16.msra.mxu0 0
        %1088 = vmatprep.subr.bf16.mxu0 0
        %1089 = vmatpush1.bf16.msra.mxu0 0
        %1090 = vmatprep.mubr.bf16.mxu0 0
        %1091 = vmatmul.mubr.bf16.gmra.mrb[0].mxu0 %v1048
        %v1092 = vpop.f32.mrb[0].mxu0
        %v1093 = vadd.f32 0.0, %v1092
        %v1094 = vpop.f32.mrb[0].mxu0
        %v1095 = vadd.f32 0.0, %v1094
        %v1096 = vpop.f32.mrb[0].mxu0
        %v1097 = vadd.f32 0.0, %v1096
        %v1098 = vpop.f32.mrb[0].mxu0
        %v1099 = vadd.f32 0.0, %v1098
        %1100 = vmatprep.mubr.bf16.mxu0 0
        %1101 = vmatmul.mubr.bf16.gmra.mrb[0].mxu0 %v1051
        %v1102 = vpop.f32.mrb[0].mxu0
        %v1103 = vadd.f32 0.0, %v1102
        %v1104 = vpop.f32.mrb[0].mxu0
        %v1105 = vadd.f32 0.0, %v1104
        %v1106 = vpop.f32.mrb[0].mxu0
        %v1107 = vadd.f32 0.0, %v1106
        %v1108 = vpop.f32.mrb[0].mxu0
        %v1109 = vadd.f32 0.0, %v1108
        %1110 = vdwg.mxu0
        %v1111 = vadd.f32 %v1016, %v1093
        %v1112 = vadd.f32 %v1017, %v1095
        %v1113 = vadd.f32 %v1018, %v1097
        %v1114 = vadd.f32 %v1019, %v1099
        %v1115 = vadd.f32 %v1020, %v1103
        %v1116 = vadd.f32 %v1021, %v1105
        %v1117 = vadd.f32 %v1022, %v1107
        %v1118 = vadd.f32 %v1023, %v1109
        %1119 = vrot.lane.b32.xlu0 %v372, 111
        %v1120 = vpop.permute.xlu0 %1119
        %1121 = vrot.lane.b32.xlu0 %v373, 111
        %v1122 = vpop.permute.xlu0 %1121
        %vm1123 = vcmask 908288
        %v1124 = vsel %vm1123, %v1120, %v1122
        %vm1125 = vcmask 908288
        %v1127 = vsel %vm1125, %v1122, 0
        %v1128 = vld [vmem:[%s3 + $0x80] sm:$0xf]
        %v1129 = vld [vmem:[%s3 + $0x84] sm:$0xf]
        %v1130 = vld [vmem:[%s3 + $0x88] sm:$0xf]
        %v1131 = vld [vmem:[%s3 + $0x8c] sm:$0xf]
        %v1136 = vunpack.c.l.b16 %v1128
        %v1137 = vunpack.c.l.b16 %v1129
        %v1138 = vunpack.c.l.b16 %v1130
        %v1139 = vunpack.c.l.b16 %v1131
        %v1140 = vpack.c.b16 %v1137, %v1136
        %v1141 = vpack.c.b16 %v1139, %v1138
        %v1143 = vsel %vm415, %v1140, 0
        %v1146 = vsel %vm415, %v1141, 0
        %v1149 = vsel %vm422, %v1124, 0
        %v1151 = vsel %vm422, %v1127, 0
        %1153 = vmatprep.subr.bf16.mxu0 %v1151
        %1154 = vmatpush1.bf16.msra.mxu0 %v1149
        %1155 = vmatprep.subr.bf16.mxu0 0
        %1156 = vmatpush1.bf16.msra.mxu0 0
        %1157 = vmatprep.subr.bf16.mxu0 0
        %1158 = vmatpush1.bf16.msra.mxu0 0
        %1159 = vmatprep.subr.bf16.mxu0 0
        %1160 = vmatpush1.bf16.msra.mxu0 0
        %1161 = vmatprep.subr.bf16.mxu0 0
        %1162 = vmatpush1.bf16.msra.mxu0 0
        %1163 = vmatprep.subr.bf16.mxu0 0
        %1164 = vmatpush1.bf16.msra.mxu0 0
        %1165 = vmatprep.subr.bf16.mxu0 0
        %1166 = vmatpush1.bf16.msra.mxu0 0
        %1167 = vmatprep.subr.bf16.mxu0 0
        %1168 = vmatpush1.bf16.msra.mxu0 0
        %1169 = vmatprep.subr.bf16.mxu0 0
        %1170 = vmatpush1.bf16.msra.mxu0 0
        %1171 = vmatprep.subr.bf16.mxu0 0
        %1172 = vmatpush1.bf16.msra.mxu0 0
        %1173 = vmatprep.subr.bf16.mxu0 0
        %1174 = vmatpush1.bf16.msra.mxu0 0
        %1175 = vmatprep.subr.bf16.mxu0 0
        %1176 = vmatpush1.bf16.msra.mxu0 0
        %1177 = vmatprep.subr.bf16.mxu0 0
        %1178 = vmatpush1.bf16.msra.mxu0 0
        %1179 = vmatprep.subr.bf16.mxu0 0
        %1180 = vmatpush1.bf16.msra.mxu0 0
        %1181 = vmatprep.subr.bf16.mxu0 0
        %1182 = vmatpush1.bf16.msra.mxu0 0
        %1183 = vmatprep.subr.bf16.mxu0 0
        %1184 = vmatpush1.bf16.msra.mxu0 0
        %1185 = vmatprep.mubr.bf16.mxu0 0
        %1186 = vmatmul.mubr.bf16.gmra.mrb[0].mxu0 %v1143
        %v1187 = vpop.f32.mrb[0].mxu0
        %v1188 = vadd.f32 0.0, %v1187
        %v1189 = vpop.f32.mrb[0].mxu0
        %v1190 = vadd.f32 0.0, %v1189
        %v1191 = vpop.f32.mrb[0].mxu0
        %v1192 = vadd.f32 0.0, %v1191
        %v1193 = vpop.f32.mrb[0].mxu0
        %v1194 = vadd.f32 0.0, %v1193
        %1195 = vmatprep.mubr.bf16.mxu0 0
        %1196 = vmatmul.mubr.bf16.gmra.mrb[0].mxu0 %v1146
        %v1197 = vpop.f32.mrb[0].mxu0
        %v1198 = vadd.f32 0.0, %v1197
        %v1199 = vpop.f32.mrb[0].mxu0
        %v1200 = vadd.f32 0.0, %v1199
        %v1201 = vpop.f32.mrb[0].mxu0
        %v1202 = vadd.f32 0.0, %v1201
        %v1203 = vpop.f32.mrb[0].mxu0
        %v1204 = vadd.f32 0.0, %v1203
        %1205 = vdwg.mxu0
        %v1206 = vadd.f32 %v1111, %v1188
        %v1207 = vadd.f32 %v1112, %v1190
        %v1208 = vadd.f32 %v1113, %v1192
        %v1209 = vadd.f32 %v1114, %v1194
        %v1210 = vadd.f32 %v1115, %v1198
        %v1211 = vadd.f32 %v1116, %v1200
        %v1212 = vadd.f32 %v1117, %v1202
        %v1213 = vadd.f32 %v1118, %v1204
        %v1214 = vld [vmem:[%s4] sm:$0xff]
        %v1215 = vld [vmem:[%s4 + $0x8] sm:$0xff]
        %v1216 = vld [vmem:[%s4 + $0x10] sm:$0xff]
        %v1217 = vld [vmem:[%s4 + $0x18] sm:$0xff]
        %1219 = vset.pattern.permute.xlu0 0
        %1220 = vperm.xlu0 %1219, %v1214
        %v1221 = vpop.permute.xlu0 %1220
        %1224 = vset.pattern.permute.xlu0 0
        %1225 = vperm.xlu0 %1224, %v1215
        %v1226 = vpop.permute.xlu0 %1225
        %1229 = vset.pattern.permute.xlu0 0
        %1230 = vperm.xlu0 %1229, %v1216
        %v1231 = vpop.permute.xlu0 %1230
        %1234 = vset.pattern.permute.xlu0 0
        %1235 = vperm.xlu0 %1234, %v1217
        %v1236 = vpop.permute.xlu0 %1235
        %v1238 = vadd.f32 %v1206, %v1221
        %v1239 = vadd.f32 %v1207, %v1221
        %v1240 = vadd.f32 %v1208, %v1226
        %v1241 = vadd.f32 %v1209, %v1226
        %v1242 = vadd.f32 %v1210, %v1231
        %v1243 = vadd.f32 %v1211, %v1231
        %v1244 = vadd.f32 %v1212, %v1236
        %v1245 = vadd.f32 %v1213, %v1236
        %v1246 = vmax.f32 %v1238, 0.0
        %v1247 = vmax.f32 %v1239, 0.0
        %v1248 = vmax.f32 %v1240, 0.0
        %v1249 = vmax.f32 %v1241, 0.0
        %v1250 = vmax.f32 %v1242, 0.0
        %v1251 = vmax.f32 %v1243, 0.0
        %v1252 = vmax.f32 %v1244, 0.0
        %v1253 = vmax.f32 %v1245, 0.0
        %v1256 = vmul.f32 %v1246, %v339
        %v1257 = vmul.f32 %v1247, %v343
        %v1258 = vmul.f32 %v1248, %v339
        %v1259 = vmul.f32 %v1249, %v343
        %v1260 = vmul.f32 %v1250, %v339
        %v1261 = vmul.f32 %v1251, %v343
        %v1262 = vmul.f32 %v1252, %v339
        %v1263 = vmul.f32 %v1253, %v343
        %v1264 = vpack.c.bf16 %v1258, %v1256
        %v1265 = vpack.c.bf16 %v1259, %v1257
        %v1266 = vpack.c.bf16 %v1262, %v1260
        %v1267 = vpack.c.bf16 %v1263, %v1261
        %v1268 = vpack.c.bf16 %v1248, %v1246
        %v1269 = vpack.c.bf16 %v1249, %v1247
        %v1270 = vpack.c.bf16 %v1252, %v1250
        %v1271 = vpack.c.bf16 %v1253, %v1251
        %v1274 = vmul.f32 %v1246, %v361
        %v1275 = vmul.f32 %v1247, %v365
        %v1276 = vmul.f32 %v1248, %v361
        %v1277 = vmul.f32 %v1249, %v365
        %v1278 = vmul.f32 %v1250, %v361
        %v1279 = vmul.f32 %v1251, %v365
        %v1280 = vmul.f32 %v1252, %v361
        %v1281 = vmul.f32 %v1253, %v365
        %v1282 = vpack.c.bf16 %v1276, %v1274
        %v1283 = vpack.c.bf16 %v1277, %v1275
        %v1284 = vpack.c.bf16 %v1280, %v1278
        %v1285 = vpack.c.bf16 %v1281, %v1279
        %1290 = vrot.lane.b32.xlu0 %v1264, 17
        %v1291 = vpop.permute.xlu0 %1290
        %1292 = vrot.lane.b32.xlu0 %v1265, 17
        %v1293 = vpop.permute.xlu0 %1292
        %1294 = vrot.lane.b32.xlu0 %v1266, 17
        %v1295 = vpop.permute.xlu0 %1294
        %1296 = vrot.lane.b32.xlu0 %v1267, 17
        %v1297 = vpop.permute.xlu0 %1296
        %v1298 = vsel %vm380, %v1291, %v1293
        %v1299 = vsel %vm380, %v1295, %v1297
        %v1303 = vsel %vm382, 0, %v1291
        %v1306 = vsel %vm382, 0, %v1295
        %v1308 = vld [vmem:[%s5] sm:$0xf]
        %v1309 = vld [vmem:[%s5 + $0x4] sm:$0xf]
        %v1310 = vld [vmem:[%s5 + $0x8] sm:$0xf]
        %v1311 = vld [vmem:[%s5 + $0xc] sm:$0xf]
        %1316 = vrot.lane.b32.xlu0 %v1268, 16
        %v1317 = vpop.permute.xlu0 %1316
        %1318 = vrot.lane.b32.xlu0 %v1269, 16
        %v1319 = vpop.permute.xlu0 %1318
        %1320 = vrot.lane.b32.xlu0 %v1270, 16
        %v1321 = vpop.permute.xlu0 %1320
        %1322 = vrot.lane.b32.xlu0 %v1271, 16
        %v1323 = vpop.permute.xlu0 %1322
        %v1324 = vsel %vm396, %v1317, %v1319
        %v1325 = vsel %vm396, %v1321, %v1323
        %v1329 = vsel %vm398, 0, %v1317
        %v1332 = vsel %vm398, 0, %v1321
        %v1334 = vld [vmem:[%s5 + $0x10] sm:$0xf]
        %v1335 = vld [vmem:[%s5 + $0x14] sm:$0xf]
        %v1336 = vld [vmem:[%s5 + $0x18] sm:$0xf]
        %v1337 = vld [vmem:[%s5 + $0x1c] sm:$0xf]
        %v1342 = vunpack.c.l.b16 %v1334
        %v1343 = vunpack.c.l.b16 %v1335
        %v1344 = vunpack.c.l.b16 %v1336
        %v1345 = vunpack.c.l.b16 %v1337
        %v1346 = vpack.c.b16 %v1343, %v1342
        %v1347 = vpack.c.b16 %v1345, %v1344
        %vm1348 = vcmask 261120
        %v1350 = vsel %vm1348, %v1346, 0
        %v1353 = vsel %vm1348, %v1347, 0
        %1355 = vmatprep.subr.bf16.mxu0 %v1324
        %1356 = vmatpush1.bf16.msra.mxu0 %v1329
        %1357 = vmatprep.subr.bf16.mxu0 %v1325
        %1358 = vmatpush1.bf16.msra.mxu0 %v1332
        %1359 = vmatprep.subr.bf16.mxu0 0
        %1360 = vmatpush1.bf16.msra.mxu0 0
        %1361 = vmatprep.subr.bf16.mxu0 0
        %1362 = vmatpush1.bf16.msra.mxu0 0
        %1363 = vmatprep.subr.bf16.mxu0 0
        %1364 = vmatpush1.bf16.msra.mxu0 0
        %1365 = vmatprep.subr.bf16.mxu0 0
        %1366 = vmatpush1.bf16.msra.mxu0 0
        %1367 = vmatprep.subr.bf16.mxu0 0
        %1368 = vmatpush1.bf16.msra.mxu0 0
        %1369 = vmatprep.subr.bf16.mxu0 0
        %1370 = vmatpush1.bf16.msra.mxu0 0
        %1371 = vmatprep.subr.bf16.mxu0 0
        %1372 = vmatpush1.bf16.msra.mxu0 0
        %1373 = vmatprep.subr.bf16.mxu0 0
        %1374 = vmatpush1.bf16.msra.mxu0 0
        %1375 = vmatprep.subr.bf16.mxu0 0
        %1376 = vmatpush1.bf16.msra.mxu0 0
        %1377 = vmatprep.subr.bf16.mxu0 0
        %1378 = vmatpush1.bf16.msra.mxu0 0
        %1379 = vmatprep.subr.bf16.mxu0 0
        %1380 = vmatpush1.bf16.msra.mxu0 0
        %1381 = vmatprep.subr.bf16.mxu0 0
        %1382 = vmatpush1.bf16.msra.mxu0 0
        %1383 = vmatprep.subr.bf16.mxu0 0
        %1384 = vmatpush1.bf16.msra.mxu0 0
        %1385 = vmatprep.subr.bf16.mxu0 0
        %1386 = vmatpush1.bf16.msra.mxu0 0
        %1387 = vmatprep.mubr.bf16.mxu0 0
        %1388 = vmatmul.mubr.bf16.gmra.mrb[0].mxu0 %v1350
        %v1389 = vpop.f32.mrb[0].mxu0
        %v1390 = vadd.f32 0.0, %v1389
        %v1391 = vpop.f32.mrb[0].mxu0
        %v1392 = vadd.f32 0.0, %v1391
        %v1393 = vpop.f32.mrb[0].mxu0
        %v1394 = vadd.f32 0.0, %v1393
        %v1395 = vpop.f32.mrb[0].mxu0
        %v1396 = vadd.f32 0.0, %v1395
        %1397 = vmatprep.mubr.bf16.mxu0 0
        %1398 = vmatmul.mubr.bf16.gmra.mrb[0].mxu0 %v1353
        %v1399 = vpop.f32.mrb[0].mxu0
        %v1400 = vadd.f32 0.0, %v1399
        %v1401 = vpop.f32.mrb[0].mxu0
        %v1402 = vadd.f32 0.0, %v1401
        %v1403 = vpop.f32.mrb[0].mxu0
        %v1404 = vadd.f32 0.0, %v1403
        %v1405 = vpop.f32.mrb[0].mxu0
        %v1406 = vadd.f32 0.0, %v1405
        %1407 = vdwg.mxu0
        %v1412 = vunpack.c.l.b16 %v1308
        %v1413 = vunpack.c.l.b16 %v1309
        %v1414 = vunpack.c.l.b16 %v1310
        %v1415 = vunpack.c.l.b16 %v1311
        %v1416 = vpack.c.b16 %v1413, %v1412
        %v1417 = vpack.c.b16 %v1415, %v1414
        %v1419 = vsel %vm1348, %v1416, 0
        %v1422 = vsel %vm1348, %v1417, 0
        %1424 = vmatprep.subr.bf16.mxu0 %v1298
        %1425 = vmatpush1.bf16.msra.mxu0 %v1303
        %1426 = vmatprep.subr.bf16.mxu0 %v1299
        %1427 = vmatpush1.bf16.msra.mxu0 %v1306
        %1428 = vmatprep.subr.bf16.mxu0 0
        %1429 = vmatpush1.bf16.msra.mxu0 0
        %1430 = vmatprep.subr.bf16.mxu0 0
        %1431 = vmatpush1.bf16.msra.mxu0 0
        %1432 = vmatprep.subr.bf16.mxu0 0
        %1433 = vmatpush1.bf16.msra.mxu0 0
        %1434 = vmatprep.subr.bf16.mxu0 0
        %1435 = vmatpush1.bf16.msra.mxu0 0
        %1436 = vmatprep.subr.bf16.mxu0 0
        %1437 = vmatpush1.bf16.msra.mxu0 0
        %1438 = vmatprep.subr.bf16.mxu0 0
        %1439 = vmatpush1.bf16.msra.mxu0 0
        %1440 = vmatprep.subr.bf16.mxu0 0
        %1441 = vmatpush1.bf16.msra.mxu0 0
        %1442 = vmatprep.subr.bf16.mxu0 0
        %1443 = vmatpush1.bf16.msra.mxu0 0
        %1444 = vmatprep.subr.bf16.mxu0 0
        %1445 = vmatpush1.bf16.msra.mxu0 0
        %1446 = vmatprep.subr.bf16.mxu0 0
        %1447 = vmatpush1.bf16.msra.mxu0 0
        %1448 = vmatprep.subr.bf16.mxu0 0
        %1449 = vmatpush1.bf16.msra.mxu0 0
        %1450 = vmatprep.subr.bf16.mxu0 0
        %1451 = vmatpush1.bf16.msra.mxu0 0
        %1452 = vmatprep.subr.bf16.mxu0 0
        %1453 = vmatpush1.bf16.msra.mxu0 0
        %1454 = vmatprep.subr.bf16.mxu0 0
        %1455 = vmatpush1.bf16.msra.mxu0 0
        %1456 = vmatprep.mubr.bf16.mxu0 0
        %1457 = vmatmul.mubr.bf16.gmra.mrb[0].mxu0 %v1419
        %v1458 = vpop.f32.mrb[0].mxu0
        %v1459 = vadd.f32 %v1390, %v1458
        %v1460 = vpop.f32.mrb[0].mxu0
        %v1461 = vadd.f32 %v1392, %v1460
        %v1462 = vpop.f32.mrb[0].mxu0
        %v1463 = vadd.f32 %v1394, %v1462
        %v1464 = vpop.f32.mrb[0].mxu0
        %v1465 = vadd.f32 %v1396, %v1464
        %1466 = vmatprep.mubr.bf16.mxu0 0
        %1467 = vmatmul.mubr.bf16.gmra.mrb[0].mxu0 %v1422
        %v1468 = vpop.f32.mrb[0].mxu0
        %v1469 = vadd.f32 %v1400, %v1468
        %v1470 = vpop.f32.mrb[0].mxu0
        %v1471 = vadd.f32 %v1402, %v1470
        %v1472 = vpop.f32.mrb[0].mxu0
        %v1473 = vadd.f32 %v1404, %v1472
        %v1474 = vpop.f32.mrb[0].mxu0
        %v1475 = vadd.f32 %v1406, %v1474
        %1476 = vdwg.mxu0
        %1481 = vrot.lane.b32.xlu0 %v1282, 15
        %v1482 = vpop.permute.xlu0 %1481
        %1483 = vrot.lane.b32.xlu0 %v1283, 15
        %v1484 = vpop.permute.xlu0 %1483
        %1485 = vrot.lane.b32.xlu0 %v1284, 15
        %v1486 = vpop.permute.xlu0 %1485
        %1487 = vrot.lane.b32.xlu0 %v1285, 15
        %v1488 = vpop.permute.xlu0 %1487
        %v1489 = vsel %vm561, %v1482, %v1484
        %v1490 = vsel %vm561, %v1486, %v1488
        %v1494 = vsel %vm563, 0, %v1482
        %v1497 = vsel %vm563, 0, %v1486
        %v1499 = vld [vmem:[%s5 + $0x20] sm:$0xf]
        %v1500 = vld [vmem:[%s5 + $0x24] sm:$0xf]
        %v1501 = vld [vmem:[%s5 + $0x28] sm:$0xf]
        %v1502 = vld [vmem:[%s5 + $0x2c] sm:$0xf]
        %v1507 = vunpack.c.l.b16 %v1499
        %v1508 = vunpack.c.l.b16 %v1500
        %v1509 = vunpack.c.l.b16 %v1501
        %v1510 = vunpack.c.l.b16 %v1502
        %v1511 = vpack.c.b16 %v1508, %v1507
        %v1512 = vpack.c.b16 %v1510, %v1509
        %v1514 = vsel %vm1348, %v1511, 0
        %v1517 = vsel %vm1348, %v1512, 0
        %1519 = vmatprep.subr.bf16.mxu0 %v1489
        %1520 = vmatpush1.bf16.msra.mxu0 %v1494
        %1521 = vmatprep.subr.bf16.mxu0 %v1490
        %1522 = vmatpush1.bf16.msra.mxu0 %v1497
        %1523 = vmatprep.subr.bf16.mxu0 0
        %1524 = vmatpush1.bf16.msra.mxu0 0
        %1525 = vmatprep.subr.bf16.mxu0 0
        %1526 = vmatpush1.bf16.msra.mxu0 0
        %1527 = vmatprep.subr.bf16.mxu0 0
        %1528 = vmatpush1.bf16.msra.mxu0 0
        %1529 = vmatprep.subr.bf16.mxu0 0
        %1530 = vmatpush1.bf16.msra.mxu0 0
        %1531 = vmatprep.subr.bf16.mxu0 0
        %1532 = vmatpush1.bf16.msra.mxu0 0
        %1533 = vmatprep.subr.bf16.mxu0 0
        %1534 = vmatpush1.bf16.msra.mxu0 0
        %1535 = vmatprep.subr.bf16.mxu0 0
        %1536 = vmatpush1.bf16.msra.mxu0 0
        %1537 = vmatprep.subr.bf16.mxu0 0
        %1538 = vmatpush1.bf16.msra.mxu0 0
        %1539 = vmatprep.subr.bf16.mxu0 0
        %1540 = vmatpush1.bf16.msra.mxu0 0
        %1541 = vmatprep.subr.bf16.mxu0 0
        %1542 = vmatpush1.bf16.msra.mxu0 0
        %1543 = vmatprep.subr.bf16.mxu0 0
        %1544 = vmatpush1.bf16.msra.mxu0 0
        %1545 = vmatprep.subr.bf16.mxu0 0
        %1546 = vmatpush1.bf16.msra.mxu0 0
        %1547 = vmatprep.subr.bf16.mxu0 0
        %1548 = vmatpush1.bf16.msra.mxu0 0
        %1549 = vmatprep.subr.bf16.mxu0 0
        %1550 = vmatpush1.bf16.msra.mxu0 0
        %1551 = vmatprep.mubr.bf16.mxu0 0
        %1552 = vmatmul.mubr.bf16.gmra.mrb[0].mxu0 %v1514
        %v1553 = vpop.f32.mrb[0].mxu0
        %v1554 = vadd.f32 0.0, %v1553
        %v1555 = vpop.f32.mrb[0].mxu0
        %v1556 = vadd.f32 0.0, %v1555
        %v1557 = vpop.f32.mrb[0].mxu0
        %v1558 = vadd.f32 0.0, %v1557
        %v1559 = vpop.f32.mrb[0].mxu0
        %v1560 = vadd.f32 0.0, %v1559
        %1561 = vmatprep.mubr.bf16.mxu0 0
        %1562 = vmatmul.mubr.bf16.gmra.mrb[0].mxu0 %v1517
        %v1563 = vpop.f32.mrb[0].mxu0
        %v1564 = vadd.f32 0.0, %v1563
        %v1565 = vpop.f32.mrb[0].mxu0
        %v1566 = vadd.f32 0.0, %v1565
        %v1567 = vpop.f32.mrb[0].mxu0
        %v1568 = vadd.f32 0.0, %v1567
        %v1569 = vpop.f32.mrb[0].mxu0
        %v1570 = vadd.f32 0.0, %v1569
        %1571 = vdwg.mxu0
        %v1572 = vadd.f32 %v1459, %v1554
        %v1573 = vadd.f32 %v1461, %v1556
        %v1574 = vadd.f32 %v1463, %v1558
        %v1575 = vadd.f32 %v1465, %v1560
        %v1576 = vadd.f32 %v1469, %v1564
        %v1577 = vadd.f32 %v1471, %v1566
        %v1578 = vadd.f32 %v1473, %v1568
        %v1579 = vadd.f32 %v1475, %v1570
        %1580 = vrot.lane.b32.xlu0 %v1264, 1
        %v1581 = vpop.permute.xlu0 %1580
        %1582 = vrot.lane.b32.xlu0 %v1265, 1
        %v1583 = vpop.permute.xlu0 %1582
        %1584 = vrot.lane.b32.xlu0 %v1266, 1
        %v1585 = vpop.permute.xlu0 %1584
        %1586 = vrot.lane.b32.xlu0 %v1267, 1
        %v1587 = vpop.permute.xlu0 %1586
        %v1588 = vsel %vm656, %v1581, %v1583
        %v1589 = vsel %vm656, %v1585, %v1587
        %v1593 = vsel %vm658, 0, %v1581
        %v1596 = vsel %vm658, 0, %v1585
        %v1598 = vld [vmem:[%s5 + $0x30] sm:$0xf]
        %v1599 = vld [vmem:[%s5 + $0x34] sm:$0xf]
        %v1600 = vld [vmem:[%s5 + $0x38] sm:$0xf]
        %v1601 = vld [vmem:[%s5 + $0x3c] sm:$0xf]
        %v1606 = vunpack.c.l.b16 %v1598
        %v1607 = vunpack.c.l.b16 %v1599
        %v1608 = vunpack.c.l.b16 %v1600
        %v1609 = vunpack.c.l.b16 %v1601
        %v1610 = vpack.c.b16 %v1607, %v1606
        %v1611 = vpack.c.b16 %v1609, %v1608
        %v1613 = vsel %vm1348, %v1610, 0
        %v1616 = vsel %vm1348, %v1611, 0
        %1618 = vmatprep.subr.bf16.mxu0 %v1588
        %1619 = vmatpush1.bf16.msra.mxu0 %v1593
        %1620 = vmatprep.subr.bf16.mxu0 %v1589
        %1621 = vmatpush1.bf16.msra.mxu0 %v1596
        %1622 = vmatprep.subr.bf16.mxu0 0
        %1623 = vmatpush1.bf16.msra.mxu0 0
        %1624 = vmatprep.subr.bf16.mxu0 0
        %1625 = vmatpush1.bf16.msra.mxu0 0
        %1626 = vmatprep.subr.bf16.mxu0 0
        %1627 = vmatpush1.bf16.msra.mxu0 0
        %1628 = vmatprep.subr.bf16.mxu0 0
        %1629 = vmatpush1.bf16.msra.mxu0 0
        %1630 = vmatprep.subr.bf16.mxu0 0
        %1631 = vmatpush1.bf16.msra.mxu0 0
        %1632 = vmatprep.subr.bf16.mxu0 0
        %1633 = vmatpush1.bf16.msra.mxu0 0
        %1634 = vmatprep.subr.bf16.mxu0 0
        %1635 = vmatpush1.bf16.msra.mxu0 0
        %1636 = vmatprep.subr.bf16.mxu0 0
        %1637 = vmatpush1.bf16.msra.mxu0 0
        %1638 = vmatprep.subr.bf16.mxu0 0
        %1639 = vmatpush1.bf16.msra.mxu0 0
        %1640 = vmatprep.subr.bf16.mxu0 0
        %1641 = vmatpush1.bf16.msra.mxu0 0
        %1642 = vmatprep.subr.bf16.mxu0 0
        %1643 = vmatpush1.bf16.msra.mxu0 0
        %1644 = vmatprep.subr.bf16.mxu0 0
        %1645 = vmatpush1.bf16.msra.mxu0 0
        %1646 = vmatprep.subr.bf16.mxu0 0
        %1647 = vmatpush1.bf16.msra.mxu0 0
        %1648 = vmatprep.subr.bf16.mxu0 0
        %1649 = vmatpush1.bf16.msra.mxu0 0
        %1650 = vmatprep.mubr.bf16.mxu0 0
        %1651 = vmatmul.mubr.bf16.gmra.mrb[0].mxu0 %v1613
        %v1652 = vpop.f32.mrb[0].mxu0
        %v1653 = vadd.f32 0.0, %v1652
        %v1654 = vpop.f32.mrb[0].mxu0
        %v1655 = vadd.f32 0.0, %v1654
        %v1656 = vpop.f32.mrb[0].mxu0
        %v1657 = vadd.f32 0.0, %v1656
        %v1658 = vpop.f32.mrb[0].mxu0
        %v1659 = vadd.f32 0.0, %v1658
        %1660 = vmatprep.mubr.bf16.mxu0 0
        %1661 = vmatmul.mubr.bf16.gmra.mrb[0].mxu0 %v1616
        %v1662 = vpop.f32.mrb[0].mxu0
        %v1663 = vadd.f32 0.0, %v1662
        %v1664 = vpop.f32.mrb[0].mxu0
        %v1665 = vadd.f32 0.0, %v1664
        %v1666 = vpop.f32.mrb[0].mxu0
        %v1667 = vadd.f32 0.0, %v1666
        %v1668 = vpop.f32.mrb[0].mxu0
        %v1669 = vadd.f32 0.0, %v1668
        %1670 = vdwg.mxu0
        %v1671 = vadd.f32 %v1572, %v1653
        %v1672 = vadd.f32 %v1573, %v1655
        %v1673 = vadd.f32 %v1574, %v1657
        %v1674 = vadd.f32 %v1575, %v1659
        %v1675 = vadd.f32 %v1576, %v1663
        %v1676 = vadd.f32 %v1577, %v1665
        %v1677 = vadd.f32 %v1578, %v1667
        %v1678 = vadd.f32 %v1579, %v1669
        %v1679 = vld [vmem:[%s5 + $0x40] sm:$0xf]
        %v1680 = vld [vmem:[%s5 + $0x44] sm:$0xf]
        %v1681 = vld [vmem:[%s5 + $0x48] sm:$0xf]
        %v1682 = vld [vmem:[%s5 + $0x4c] sm:$0xf]
        %v1687 = vunpack.c.l.b16 %v1679
        %v1688 = vunpack.c.l.b16 %v1680
        %v1689 = vunpack.c.l.b16 %v1681
        %v1690 = vunpack.c.l.b16 %v1682
        %v1691 = vpack.c.b16 %v1688, %v1687
        %v1692 = vpack.c.b16 %v1690, %v1689
        %v1694 = vsel %vm1348, %v1691, 0
        %v1697 = vsel %vm1348, %v1692, 0
        %1699 = vmatprep.subr.bf16.mxu0 %v1269
        %1700 = vmatpush1.bf16.msra.mxu0 %v1268
        %1701 = vmatprep.subr.bf16.mxu0 %v1271
        %1702 = vmatpush1.bf16.msra.mxu0 %v1270
        %1703 = vmatprep.subr.bf16.mxu0 0
        %1704 = vmatpush1.bf16.msra.mxu0 0
        %1705 = vmatprep.subr.bf16.mxu0 0
        %1706 = vmatpush1.bf16.msra.mxu0 0
        %1707 = vmatprep.subr.bf16.mxu0 0
        %1708 = vmatpush1.bf16.msra.mxu0 0
        %1709 = vmatprep.subr.bf16.mxu0 0
        %1710 = vmatpush1.bf16.msra.mxu0 0
        %1711 = vmatprep.subr.bf16.mxu0 0
        %1712 = vmatpush1.bf16.msra.mxu0 0
        %1713 = vmatprep.subr.bf16.mxu0 0
        %1714 = vmatpush1.bf16.msra.mxu0 0
        %1715 = vmatprep.subr.bf16.mxu0 0
        %1716 = vmatpush1.bf16.msra.mxu0 0
        %1717 = vmatprep.subr.bf16.mxu0 0
        %1718 = vmatpush1.bf16.msra.mxu0 0
        %1719 = vmatprep.subr.bf16.mxu0 0
        %1720 = vmatpush1.bf16.msra.mxu0 0
        %1721 = vmatprep.subr.bf16.mxu0 0
        %1722 = vmatpush1.bf16.msra.mxu0 0
        %1723 = vmatprep.subr.bf16.mxu0 0
        %1724 = vmatpush1.bf16.msra.mxu0 0
        %1725 = vmatprep.subr.bf16.mxu0 0
        %1726 = vmatpush1.bf16.msra.mxu0 0
        %1727 = vmatprep.subr.bf16.mxu0 0
        %1728 = vmatpush1.bf16.msra.mxu0 0
        %1729 = vmatprep.subr.bf16.mxu0 0
        %1730 = vmatpush1.bf16.msra.mxu0 0
        %1731 = vmatprep.mubr.bf16.mxu0 0
        %1732 = vmatmul.mubr.bf16.gmra.mrb[0].mxu0 %v1694
        %v1733 = vpop.f32.mrb[0].mxu0
        %v1734 = vadd.f32 0.0, %v1733
        %v1735 = vpop.f32.mrb[0].mxu0
        %v1736 = vadd.f32 0.0, %v1735
        %v1737 = vpop.f32.mrb[0].mxu0
        %v1738 = vadd.f32 0.0, %v1737
        %v1739 = vpop.f32.mrb[0].mxu0
        %v1740 = vadd.f32 0.0, %v1739
        %1741 = vmatprep.mubr.bf16.mxu0 0
        %1742 = vmatmul.mubr.bf16.gmra.mrb[0].mxu0 %v1697
        %v1743 = vpop.f32.mrb[0].mxu0
        %v1744 = vadd.f32 0.0, %v1743
        %v1745 = vpop.f32.mrb[0].mxu0
        %v1746 = vadd.f32 0.0, %v1745
        %v1747 = vpop.f32.mrb[0].mxu0
        %v1748 = vadd.f32 0.0, %v1747
        %v1749 = vpop.f32.mrb[0].mxu0
        %v1750 = vadd.f32 0.0, %v1749
        %1751 = vdwg.mxu0
        %v1752 = vadd.f32 %v1671, %v1734
        %v1753 = vadd.f32 %v1672, %v1736
        %v1754 = vadd.f32 %v1673, %v1738
        %v1755 = vadd.f32 %v1674, %v1740
        %v1756 = vadd.f32 %v1675, %v1744
        %v1757 = vadd.f32 %v1676, %v1746
        %v1758 = vadd.f32 %v1677, %v1748
        %v1759 = vadd.f32 %v1678, %v1750
        %1760 = vrot.lane.b32.xlu0 %v1282, 127
        %v1761 = vpop.permute.xlu0 %1760
        %1762 = vrot.lane.b32.xlu0 %v1283, 127
        %v1763 = vpop.permute.xlu0 %1762
        %1764 = vrot.lane.b32.xlu0 %v1284, 127
        %v1765 = vpop.permute.xlu0 %1764
        %1766 = vrot.lane.b32.xlu0 %v1285, 127
        %v1767 = vpop.permute.xlu0 %1766
        %v1768 = vsel %vm838, %v1761, %v1763
        %v1769 = vsel %vm838, %v1765, %v1767
        %v1773 = vsel %vm840, %v1763, 0
        %v1776 = vsel %vm840, %v1767, 0
        %v1778 = vld [vmem:[%s5 + $0x50] sm:$0xf]
        %v1779 = vld [vmem:[%s5 + $0x54] sm:$0xf]
        %v1780 = vld [vmem:[%s5 + $0x58] sm:$0xf]
        %v1781 = vld [vmem:[%s5 + $0x5c] sm:$0xf]
        %v1786 = vunpack.c.l.b16 %v1778
        %v1787 = vunpack.c.l.b16 %v1779
        %v1788 = vunpack.c.l.b16 %v1780
        %v1789 = vunpack.c.l.b16 %v1781
        %v1790 = vpack.c.b16 %v1787, %v1786
        %v1791 = vpack.c.b16 %v1789, %v1788
        %v1793 = vsel %vm1348, %v1790, 0
        %v1796 = vsel %vm1348, %v1791, 0
        %1798 = vmatprep.subr.bf16.mxu0 %v1773
        %1799 = vmatpush1.bf16.msra.mxu0 %v1768
        %1800 = vmatprep.subr.bf16.mxu0 %v1776
        %1801 = vmatpush1.bf16.msra.mxu0 %v1769
        %1802 = vmatprep.subr.bf16.mxu0 0
        %1803 = vmatpush1.bf16.msra.mxu0 0
        %1804 = vmatprep.subr.bf16.mxu0 0
        %1805 = vmatpush1.bf16.msra.mxu0 0
        %1806 = vmatprep.subr.bf16.mxu0 0
        %1807 = vmatpush1.bf16.msra.mxu0 0
        %1808 = vmatprep.subr.bf16.mxu0 0
        %1809 = vmatpush1.bf16.msra.mxu0 0
        %1810 = vmatprep.subr.bf16.mxu0 0
        %1811 = vmatpush1.bf16.msra.mxu0 0
        %1812 = vmatprep.subr.bf16.mxu0 0
        %1813 = vmatpush1.bf16.msra.mxu0 0
        %1814 = vmatprep.subr.bf16.mxu0 0
        %1815 = vmatpush1.bf16.msra.mxu0 0
        %1816 = vmatprep.subr.bf16.mxu0 0
        %1817 = vmatpush1.bf16.msra.mxu0 0
        %1818 = vmatprep.subr.bf16.mxu0 0
        %1819 = vmatpush1.bf16.msra.mxu0 0
        %1820 = vmatprep.subr.bf16.mxu0 0
        %1821 = vmatpush1.bf16.msra.mxu0 0
        %1822 = vmatprep.subr.bf16.mxu0 0
        %1823 = vmatpush1.bf16.msra.mxu0 0
        %1824 = vmatprep.subr.bf16.mxu0 0
        %1825 = vmatpush1.bf16.msra.mxu0 0
        %1826 = vmatprep.subr.bf16.mxu0 0
        %1827 = vmatpush1.bf16.msra.mxu0 0
        %1828 = vmatprep.subr.bf16.mxu0 0
        %1829 = vmatpush1.bf16.msra.mxu0 0
        %1830 = vmatprep.mubr.bf16.mxu0 0
        %1831 = vmatmul.mubr.bf16.gmra.mrb[0].mxu0 %v1793
        %v1832 = vpop.f32.mrb[0].mxu0
        %v1833 = vadd.f32 0.0, %v1832
        %v1834 = vpop.f32.mrb[0].mxu0
        %v1835 = vadd.f32 0.0, %v1834
        %v1836 = vpop.f32.mrb[0].mxu0
        %v1837 = vadd.f32 0.0, %v1836
        %v1838 = vpop.f32.mrb[0].mxu0
        %v1839 = vadd.f32 0.0, %v1838
        %1840 = vmatprep.mubr.bf16.mxu0 0
        %1841 = vmatmul.mubr.bf16.gmra.mrb[0].mxu0 %v1796
        %v1842 = vpop.f32.mrb[0].mxu0
        %v1843 = vadd.f32 0.0, %v1842
        %v1844 = vpop.f32.mrb[0].mxu0
        %v1845 = vadd.f32 0.0, %v1844
        %v1846 = vpop.f32.mrb[0].mxu0
        %v1847 = vadd.f32 0.0, %v1846
        %v1848 = vpop.f32.mrb[0].mxu0
        %v1849 = vadd.f32 0.0, %v1848
        %1850 = vdwg.mxu0
        %v1851 = vadd.f32 %v1752, %v1833
        %v1852 = vadd.f32 %v1753, %v1835
        %v1853 = vadd.f32 %v1754, %v1837
        %v1854 = vadd.f32 %v1755, %v1839
        %v1855 = vadd.f32 %v1756, %v1843
        %v1856 = vadd.f32 %v1757, %v1845
        %v1857 = vadd.f32 %v1758, %v1847
        %v1858 = vadd.f32 %v1759, %v1849
        %1859 = vrot.lane.b32.xlu0 %v1264, 113
        %v1860 = vpop.permute.xlu0 %1859
        %1861 = vrot.lane.b32.xlu0 %v1265, 113
        %v1862 = vpop.permute.xlu0 %1861
        %1863 = vrot.lane.b32.xlu0 %v1266, 113
        %v1864 = vpop.permute.xlu0 %1863
        %1865 = vrot.lane.b32.xlu0 %v1267, 113
        %v1866 = vpop.permute.xlu0 %1865
        %v1867 = vsel %vm933, %v1860, %v1862
        %v1868 = vsel %vm933, %v1864, %v1866
        %v1872 = vsel %vm935, %v1862, 0
        %v1875 = vsel %vm935, %v1866, 0
        %v1877 = vld [vmem:[%s5 + $0x60] sm:$0xf]
        %v1878 = vld [vmem:[%s5 + $0x64] sm:$0xf]
        %v1879 = vld [vmem:[%s5 + $0x68] sm:$0xf]
        %v1880 = vld [vmem:[%s5 + $0x6c] sm:$0xf]
        %v1885 = vunpack.c.l.b16 %v1877
        %v1886 = vunpack.c.l.b16 %v1878
        %v1887 = vunpack.c.l.b16 %v1879
        %v1888 = vunpack.c.l.b16 %v1880
        %v1889 = vpack.c.b16 %v1886, %v1885
        %v1890 = vpack.c.b16 %v1888, %v1887
        %v1892 = vsel %vm1348, %v1889, 0
        %v1895 = vsel %vm1348, %v1890, 0
        %1897 = vmatprep.subr.bf16.mxu0 %v1872
        %1898 = vmatpush1.bf16.msra.mxu0 %v1867
        %1899 = vmatprep.subr.bf16.mxu0 %v1875
        %1900 = vmatpush1.bf16.msra.mxu0 %v1868
        %1901 = vmatprep.subr.bf16.mxu0 0
        %1902 = vmatpush1.bf16.msra.mxu0 0
        %1903 = vmatprep.subr.bf16.mxu0 0
        %1904 = vmatpush1.bf16.msra.mxu0 0
        %1905 = vmatprep.subr.bf16.mxu0 0
        %1906 = vmatpush1.bf16.msra.mxu0 0
        %1907 = vmatprep.subr.bf16.mxu0 0
        %1908 = vmatpush1.bf16.msra.mxu0 0
        %1909 = vmatprep.subr.bf16.mxu0 0
        %1910 = vmatpush1.bf16.msra.mxu0 0
        %1911 = vmatprep.subr.bf16.mxu0 0
        %1912 = vmatpush1.bf16.msra.mxu0 0
        %1913 = vmatprep.subr.bf16.mxu0 0
        %1914 = vmatpush1.bf16.msra.mxu0 0
        %1915 = vmatprep.subr.bf16.mxu0 0
        %1916 = vmatpush1.bf16.msra.mxu0 0
        %1917 = vmatprep.subr.bf16.mxu0 0
        %1918 = vmatpush1.bf16.msra.mxu0 0
        %1919 = vmatprep.subr.bf16.mxu0 0
        %1920 = vmatpush1.bf16.msra.mxu0 0
        %1921 = vmatprep.subr.bf16.mxu0 0
        %1922 = vmatpush1.bf16.msra.mxu0 0
        %1923 = vmatprep.subr.bf16.mxu0 0
        %1924 = vmatpush1.bf16.msra.mxu0 0
        %1925 = vmatprep.subr.bf16.mxu0 0
        %1926 = vmatpush1.bf16.msra.mxu0 0
        %1927 = vmatprep.subr.bf16.mxu0 0
        %1928 = vmatpush1.bf16.msra.mxu0 0
        %1929 = vmatprep.mubr.bf16.mxu0 0
        %1930 = vmatmul.mubr.bf16.gmra.mrb[0].mxu0 %v1892
        %v1931 = vpop.f32.mrb[0].mxu0
        %v1932 = vadd.f32 0.0, %v1931
        %v1933 = vpop.f32.mrb[0].mxu0
        %v1934 = vadd.f32 0.0, %v1933
        %v1935 = vpop.f32.mrb[0].mxu0
        %v1936 = vadd.f32 0.0, %v1935
        %v1937 = vpop.f32.mrb[0].mxu0
        %v1938 = vadd.f32 0.0, %v1937
        %1939 = vmatprep.mubr.bf16.mxu0 0
        %1940 = vmatmul.mubr.bf16.gmra.mrb[0].mxu0 %v1895
        %v1941 = vpop.f32.mrb[0].mxu0
        %v1942 = vadd.f32 0.0, %v1941
        %v1943 = vpop.f32.mrb[0].mxu0
        %v1944 = vadd.f32 0.0, %v1943
        %v1945 = vpop.f32.mrb[0].mxu0
        %v1946 = vadd.f32 0.0, %v1945
        %v1947 = vpop.f32.mrb[0].mxu0
        %v1948 = vadd.f32 0.0, %v1947
        %1949 = vdwg.mxu0
        %v1950 = vadd.f32 %v1851, %v1932
        %v1951 = vadd.f32 %v1852, %v1934
        %v1952 = vadd.f32 %v1853, %v1936
        %v1953 = vadd.f32 %v1854, %v1938
        %v1954 = vadd.f32 %v1855, %v1942
        %v1955 = vadd.f32 %v1856, %v1944
        %v1956 = vadd.f32 %v1857, %v1946
        %v1957 = vadd.f32 %v1858, %v1948
        %1958 = vrot.lane.b32.xlu0 %v1268, 112
        %v1959 = vpop.permute.xlu0 %1958
        %1960 = vrot.lane.b32.xlu0 %v1269, 112
        %v1961 = vpop.permute.xlu0 %1960
        %1962 = vrot.lane.b32.xlu0 %v1270, 112
        %v1963 = vpop.permute.xlu0 %1962
        %1964 = vrot.lane.b32.xlu0 %v1271, 112
        %v1965 = vpop.permute.xlu0 %1964
        %v1966 = vsel %vm1028, %v1959, %v1961
        %v1967 = vsel %vm1028, %v1963, %v1965
        %v1971 = vsel %vm1030, %v1961, 0
        %v1974 = vsel %vm1030, %v1965, 0
        %v1976 = vld [vmem:[%s5 + $0x70] sm:$0xf]
        %v1977 = vld [vmem:[%s5 + $0x74] sm:$0xf]
        %v1978 = vld [vmem:[%s5 + $0x78] sm:$0xf]
        %v1979 = vld [vmem:[%s5 + $0x7c] sm:$0xf]
        %v1984 = vunpack.c.l.b16 %v1976
        %v1985 = vunpack.c.l.b16 %v1977
        %v1986 = vunpack.c.l.b16 %v1978
        %v1987 = vunpack.c.l.b16 %v1979
        %v1988 = vpack.c.b16 %v1985, %v1984
        %v1989 = vpack.c.b16 %v1987, %v1986
        %v1991 = vsel %vm1348, %v1988, 0
        %v1994 = vsel %vm1348, %v1989, 0
        %1996 = vmatprep.subr.bf16.mxu0 %v1971
        %1997 = vmatpush1.bf16.msra.mxu0 %v1966
        %1998 = vmatprep.subr.bf16.mxu0 %v1974
        %1999 = vmatpush1.bf16.msra.mxu0 %v1967
        %2000 = vmatprep.subr.bf16.mxu0 0
        %2001 = vmatpush1.bf16.msra.mxu0 0
        %2002 = vmatprep.subr.bf16.mxu0 0
        %2003 = vmatpush1.bf16.msra.mxu0 0
        %2004 = vmatprep.subr.bf16.mxu0 0
        %2005 = vmatpush1.bf16.msra.mxu0 0
        %2006 = vmatprep.subr.bf16.mxu0 0
        %2007 = vmatpush1.bf16.msra.mxu0 0
        %2008 = vmatprep.subr.bf16.mxu0 0
        %2009 = vmatpush1.bf16.msra.mxu0 0
        %2010 = vmatprep.subr.bf16.mxu0 0
        %2011 = vmatpush1.bf16.msra.mxu0 0
        %2012 = vmatprep.subr.bf16.mxu0 0
        %2013 = vmatpush1.bf16.msra.mxu0 0
        %2014 = vmatprep.subr.bf16.mxu0 0
        %2015 = vmatpush1.bf16.msra.mxu0 0
        %2016 = vmatprep.subr.bf16.mxu0 0
        %2017 = vmatpush1.bf16.msra.mxu0 0
        %2018 = vmatprep.subr.bf16.mxu0 0
        %2019 = vmatpush1.bf16.msra.mxu0 0
        %2020 = vmatprep.subr.bf16.mxu0 0
        %2021 = vmatpush1.bf16.msra.mxu0 0
        %2022 = vmatprep.subr.bf16.mxu0 0
        %2023 = vmatpush1.bf16.msra.mxu0 0
        %2024 = vmatprep.subr.bf16.mxu0 0
        %2025 = vmatpush1.bf16.msra.mxu0 0
        %2026 = vmatprep.subr.bf16.mxu0 0
        %2027 = vmatpush1.bf16.msra.mxu0 0
        %2028 = vmatprep.mubr.bf16.mxu0 0
        %2029 = vmatmul.mubr.bf16.gmra.mrb[0].mxu0 %v1991
        %v2030 = vpop.f32.mrb[0].mxu0
        %v2031 = vadd.f32 0.0, %v2030
        %v2032 = vpop.f32.mrb[0].mxu0
        %v2033 = vadd.f32 0.0, %v2032
        %v2034 = vpop.f32.mrb[0].mxu0
        %v2035 = vadd.f32 0.0, %v2034
        %v2036 = vpop.f32.mrb[0].mxu0
        %v2037 = vadd.f32 0.0, %v2036
        %2038 = vmatprep.mubr.bf16.mxu0 0
        %2039 = vmatmul.mubr.bf16.gmra.mrb[0].mxu0 %v1994
        %v2040 = vpop.f32.mrb[0].mxu0
        %v2041 = vadd.f32 0.0, %v2040
        %v2042 = vpop.f32.mrb[0].mxu0
        %v2043 = vadd.f32 0.0, %v2042
        %v2044 = vpop.f32.mrb[0].mxu0
        %v2045 = vadd.f32 0.0, %v2044
        %v2046 = vpop.f32.mrb[0].mxu0
        %v2047 = vadd.f32 0.0, %v2046
        %2048 = vdwg.mxu0
        %v2049 = vadd.f32 %v1950, %v2031
        %v2050 = vadd.f32 %v1951, %v2033
        %v2051 = vadd.f32 %v1952, %v2035
        %v2052 = vadd.f32 %v1953, %v2037
        %v2053 = vadd.f32 %v1954, %v2041
        %v2054 = vadd.f32 %v1955, %v2043
        %v2055 = vadd.f32 %v1956, %v2045
        %v2056 = vadd.f32 %v1957, %v2047
        %2057 = vrot.lane.b32.xlu0 %v1282, 111
        %v2058 = vpop.permute.xlu0 %2057
        %2059 = vrot.lane.b32.xlu0 %v1283, 111
        %v2060 = vpop.permute.xlu0 %2059
        %2061 = vrot.lane.b32.xlu0 %v1284, 111
        %v2062 = vpop.permute.xlu0 %2061
        %2063 = vrot.lane.b32.xlu0 %v1285, 111
        %v2064 = vpop.permute.xlu0 %2063
        %v2065 = vsel %vm1123, %v2058, %v2060
        %v2066 = vsel %vm1123, %v2062, %v2064
        %v2070 = vsel %vm1125, %v2060, 0
        %v2073 = vsel %vm1125, %v2064, 0
        %v2075 = vld [vmem:[%s5 + $0x80] sm:$0xf]
        %v2076 = vld [vmem:[%s5 + $0x84] sm:$0xf]
        %v2077 = vld [vmem:[%s5 + $0x88] sm:$0xf]
        %v2078 = vld [vmem:[%s5 + $0x8c] sm:$0xf]
        %v2083 = vunpack.c.l.b16 %v2075
        %v2084 = vunpack.c.l.b16 %v2076
        %v2085 = vunpack.c.l.b16 %v2077
        %v2086 = vunpack.c.l.b16 %v2078
        %v2087 = vpack.c.b16 %v2084, %v2083
        %v2088 = vpack.c.b16 %v2086, %v2085
        %v2090 = vsel %vm1348, %v2087, 0
        %v2093 = vsel %vm1348, %v2088, 0
        %2095 = vmatprep.subr.bf16.mxu0 %v2070
        %2096 = vmatpush1.bf16.msra.mxu0 %v2065
        %2097 = vmatprep.subr.bf16.mxu0 %v2073
        %2098 = vmatpush1.bf16.msra.mxu0 %v2066
        %2099 = vmatprep.subr.bf16.mxu0 0
        %2100 = vmatpush1.bf16.msra.mxu0 0
        %2101 = vmatprep.subr.bf16.mxu0 0
        %2102 = vmatpush1.bf16.msra.mxu0 0
        %2103 = vmatprep.subr.bf16.mxu0 0
        %2104 = vmatpush1.bf16.msra.mxu0 0
        %2105 = vmatprep.subr.bf16.mxu0 0
        %2106 = vmatpush1.bf16.msra.mxu0 0
        %2107 = vmatprep.subr.bf16.mxu0 0
        %2108 = vmatpush1.bf16.msra.mxu0 0
        %2109 = vmatprep.subr.bf16.mxu0 0
        %2110 = vmatpush1.bf16.msra.mxu0 0
        %2111 = vmatprep.subr.bf16.mxu0 0
        %2112 = vmatpush1.bf16.msra.mxu0 0
        %2113 = vmatprep.subr.bf16.mxu0 0
        %2114 = vmatpush1.bf16.msra.mxu0 0
        %2115 = vmatprep.subr.bf16.mxu0 0
        %2116 = vmatpush1.bf16.msra.mxu0 0
        %2117 = vmatprep.subr.bf16.mxu0 0
        %2118 = vmatpush1.bf16.msra.mxu0 0
        %2119 = vmatprep.subr.bf16.mxu0 0
        %2120 = vmatpush1.bf16.msra.mxu0 0
        %2121 = vmatprep.subr.bf16.mxu0 0
        %2122 = vmatpush1.bf16.msra.mxu0 0
        %2123 = vmatprep.subr.bf16.mxu0 0
        %2124 = vmatpush1.bf16.msra.mxu0 0
        %2125 = vmatprep.subr.bf16.mxu0 0
        %2126 = vmatpush1.bf16.msra.mxu0 0
        %2127 = vmatprep.mubr.bf16.mxu0 0
        %2128 = vmatmul.mubr.bf16.gmra.mrb[0].mxu0 %v2090
        %v2129 = vpop.f32.mrb[0].mxu0
        %v2130 = vadd.f32 0.0, %v2129
        %v2131 = vpop.f32.mrb[0].mxu0
        %v2132 = vadd.f32 0.0, %v2131
        %v2133 = vpop.f32.mrb[0].mxu0
        %v2134 = vadd.f32 0.0, %v2133
        %v2135 = vpop.f32.mrb[0].mxu0
        %v2136 = vadd.f32 0.0, %v2135
        %2137 = vmatprep.mubr.bf16.mxu0 0
        %2138 = vmatmul.mubr.bf16.gmra.mrb[0].mxu0 %v2093
        %v2139 = vpop.f32.mrb[0].mxu0
        %v2140 = vadd.f32 0.0, %v2139
        %v2141 = vpop.f32.mrb[0].mxu0
        %v2142 = vadd.f32 0.0, %v2141
        %v2143 = vpop.f32.mrb[0].mxu0
        %v2144 = vadd.f32 0.0, %v2143
        %v2145 = vpop.f32.mrb[0].mxu0
        %v2146 = vadd.f32 0.0, %v2145
        %2147 = vdwg.mxu0
        %v2148 = vadd.f32 %v2049, %v2130
        %v2149 = vadd.f32 %v2050, %v2132
        %v2150 = vadd.f32 %v2051, %v2134
        %v2151 = vadd.f32 %v2052, %v2136
        %v2152 = vadd.f32 %v2053, %v2140
        %v2153 = vadd.f32 %v2054, %v2142
        %v2154 = vadd.f32 %v2055, %v2144
        %v2155 = vadd.f32 %v2056, %v2146
        %v2156 = vld [vmem:[%s6] sm:$0xff]
        %v2157 = vld [vmem:[%s6 + $0x8] sm:$0xff]
        %v2158 = vld [vmem:[%s6 + $0x10] sm:$0xff]
        %v2159 = vld [vmem:[%s6 + $0x18] sm:$0xff]
        %2161 = vset.pattern.permute.xlu0 0
        %2162 = vperm.xlu0 %2161, %v2156
        %v2163 = vpop.permute.xlu0 %2162
        %2166 = vset.pattern.permute.xlu0 0
        %2167 = vperm.xlu0 %2166, %v2157
        %v2168 = vpop.permute.xlu0 %2167
        %2171 = vset.pattern.permute.xlu0 0
        %2172 = vperm.xlu0 %2171, %v2158
        %v2173 = vpop.permute.xlu0 %2172
        %2176 = vset.pattern.permute.xlu0 0
        %2177 = vperm.xlu0 %2176, %v2159
        %v2178 = vpop.permute.xlu0 %2177
        %v2180 = vadd.f32 %v2148, %v2163
        %v2181 = vadd.f32 %v2149, %v2163
        %v2182 = vadd.f32 %v2150, %v2168
        %v2183 = vadd.f32 %v2151, %v2168
        %v2184 = vadd.f32 %v2152, %v2173
        %v2185 = vadd.f32 %v2153, %v2173
        %v2186 = vadd.f32 %v2154, %v2178
        %v2187 = vadd.f32 %v2155, %v2178
        %v2188 = vmax.f32 %v2180, 0.0
        %v2189 = vmax.f32 %v2181, 0.0
        %v2190 = vmax.f32 %v2182, 0.0
        %v2191 = vmax.f32 %v2183, 0.0
        %v2192 = vmax.f32 %v2184, 0.0
        %v2193 = vmax.f32 %v2185, 0.0
        %v2194 = vmax.f32 %v2186, 0.0
        %v2195 = vmax.f32 %v2187, 0.0
        %v2196 = vld [vmem:[%s7] sm:$0xf]
        %v2197 = vld [vmem:[%s7 + $0x4] sm:$0xf]
        %v2198 = vld [vmem:[%s7 + $0x8] sm:$0xf]
        %v2199 = vld [vmem:[%s7 + $0xc] sm:$0xf]
        %v2200 = vpack.c.bf16 %v2190, %v2188
        %v2201 = vpack.c.bf16 %v2191, %v2189
        %v2202 = vpack.c.bf16 %v2194, %v2192
        %v2203 = vpack.c.bf16 %v2195, %v2193
        %v2204 = vld [vmem:[%s8] sm:$0xff]
        %v2205 = vld [vmem:[%s8 + $0x8] sm:$0xff]
        %v2206 = vld [vmem:[%s8 + $0x10] sm:$0xff]
        %v2207 = vld [vmem:[%s8 + $0x18] sm:$0xff]
        %2209 = vset.pattern.permute.xlu0 0
        %2210 = vperm.xlu0 %2209, %v2204
        %v2211 = vpop.permute.xlu0 %2210
        %2214 = vset.pattern.permute.xlu0 0
        %2215 = vperm.xlu0 %2214, %v2205
        %v2216 = vpop.permute.xlu0 %2215
        %2219 = vset.pattern.permute.xlu0 0
        %2220 = vperm.xlu0 %2219, %v2206
        %v2221 = vpop.permute.xlu0 %2220
        %2224 = vset.pattern.permute.xlu0 0
        %2225 = vperm.xlu0 %2224, %v2207
        %v2226 = vpop.permute.xlu0 %2225
        %v2232 = vunpack.c.l.b16 %v2196
        %v2233 = vunpack.c.l.b16 %v2197
        %v2234 = vunpack.c.l.b16 %v2198
        %v2235 = vunpack.c.l.b16 %v2199
        %v2236 = vpack.c.b16 %v2233, %v2232
        %v2237 = vpack.c.b16 %v2235, %v2234
        %v2239 = vsel %vm1348, %v2236, 0
        %v2242 = vsel %vm1348, %v2237, 0
        %2244 = vmatprep.subr.bf16.mxu0 %v2201
        %2245 = vmatpush1.bf16.msra.mxu0 %v2200
        %2246 = vmatprep.subr.bf16.mxu0 %v2203
        %2247 = vmatpush1.bf16.msra.mxu0 %v2202
        %2248 = vmatprep.subr.bf16.mxu0 0
        %2249 = vmatpush1.bf16.msra.mxu0 0
        %2250 = vmatprep.subr.bf16.mxu0 0
        %2251 = vmatpush1.bf16.msra.mxu0 0
        %2252 = vmatprep.subr.bf16.mxu0 0
        %2253 = vmatpush1.bf16.msra.mxu0 0
        %2254 = vmatprep.subr.bf16.mxu0 0
        %2255 = vmatpush1.bf16.msra.mxu0 0
        %2256 = vmatprep.subr.bf16.mxu0 0
        %2257 = vmatpush1.bf16.msra.mxu0 0
        %2258 = vmatprep.subr.bf16.mxu0 0
        %2259 = vmatpush1.bf16.msra.mxu0 0
        %2260 = vmatprep.subr.bf16.mxu0 0
        %2261 = vmatpush1.bf16.msra.mxu0 0
        %2262 = vmatprep.subr.bf16.mxu0 0
        %2263 = vmatpush1.bf16.msra.mxu0 0
        %2264 = vmatprep.subr.bf16.mxu0 0
        %2265 = vmatpush1.bf16.msra.mxu0 0
        %2266 = vmatprep.subr.bf16.mxu0 0
        %2267 = vmatpush1.bf16.msra.mxu0 0
        %2268 = vmatprep.subr.bf16.mxu0 0
        %2269 = vmatpush1.bf16.msra.mxu0 0
        %2270 = vmatprep.subr.bf16.mxu0 0
        %2271 = vmatpush1.bf16.msra.mxu0 0
        %2272 = vmatprep.subr.bf16.mxu0 0
        %2273 = vmatpush1.bf16.msra.mxu0 0
        %2274 = vmatprep.subr.bf16.mxu0 0
        %2275 = vmatpush1.bf16.msra.mxu0 0
        %2276 = vmatprep.mubr.bf16.mxu0 0
        %2277 = vmatmul.mubr.bf16.gmra.mrb[0].mxu0 %v2239
        %v2278 = vpop.f32.mrb[0].mxu0
        %v2279 = vadd.f32 %v2211, %v2278
        %v2280 = vpop.f32.mrb[0].mxu0
        %v2281 = vadd.f32 %v2211, %v2280
        %v2282 = vpop.f32.mrb[0].mxu0
        %v2283 = vadd.f32 %v2216, %v2282
        %v2284 = vpop.f32.mrb[0].mxu0
        %v2285 = vadd.f32 %v2216, %v2284
        %2286 = vmatprep.mubr.bf16.mxu0 0
        %2287 = vmatmul.mubr.bf16.gmra.mrb[0].mxu0 %v2242
        %v2288 = vpop.f32.mrb[0].mxu0
        %v2289 = vadd.f32 %v2221, %v2288
        %v2290 = vpop.f32.mrb[0].mxu0
        %v2291 = vadd.f32 %v2221, %v2290
        %v2292 = vpop.f32.mrb[0].mxu0
        %v2293 = vadd.f32 %v2226, %v2292
        %v2294 = vpop.f32.mrb[0].mxu0
        %v2295 = vadd.f32 %v2226, %v2294
        %2296 = vdwg.mxu0
        %2297 = vst [vmem:[%s325] sm:$0xff] %v2279
        %2298 = vst [vmem:[%s325 + $0x8] sm:$0xff] %v2281
        %2299 = vst [vmem:[%s325 + $0x10] sm:$0xff] %v2283
        %2300 = vst [vmem:[%s325 + $0x18] sm:$0xff] %v2285
        %2301 = vst [vmem:[%s325 + $0x20] sm:$0xff] %v2289
        %2302 = vst [vmem:[%s325 + $0x28] sm:$0xff] %v2291
        %2303 = vst [vmem:[%s325 + $0x30] sm:$0xff] %v2293
        %2304 = vst [vmem:[%s325 + $0x38] sm:$0xff] %v2295
        %s2305 = sand.u32 %s225, 1
        %s2306 = scalar_lea.sflag [#allocation3], %s2305
        %s2307 = sand.u32 %s225, 1
        %s2308 = smul.addr %s2307, 64
        %s2309 = scalar_lea.vmem [#allocation2], %s2308
        // Predicated region
        $region57: #{tpu_custom_call.1} parent=55 // pred_check
          %p2310 = pneg %p235
        $region58: #{tpu_custom_call.1} parent=55 // pred_check_branch
          %2312 = sbr.rel (%p2310) target = $region60
        $region59: #{tpu_custom_call.1} parent=55 // pred_region
          %s2314 = ssub.s32 1024, 1024
          %2315 = vsyncadd %s2306, %s2314
          %s2316 = smul.addr %s23, 8
          %s2317 = smul.addr %s2316, 128
          %s2318 = scalar_lea.hbm %s9, %s2317
          %s2319 = sshll.u32 %s2309, 4
          %s2320 = int_to_ptr.vmem [resolvable:$true] %s2319
          %2325 = dma.vmem_to_hbm [thread:$0]  %s2320, 1024, %s2318, %s2306, 256, 256, 16
        $region60: #{tpu_custom_call.1} parent=55 // pred_fallthru
          _
      $region56: #{tpu_custom_call.1} parent=5 // pred_fallthru
        _
      %p2326 = scmp.le.s32.totalorder 2, %s18
      // Predicated region
      $region61: #{tpu_custom_call.1} parent=5 // pred_check
        %p2327 = pneg %p2326
      $region62: #{tpu_custom_call.1} parent=5 // pred_check_branch
        %2329 = sbr.rel (%p2327) target = $region64
      $region63: #{tpu_custom_call.1} parent=5 // pred_region
        %s2330 = ssub.s32 %s18, 2
        // Predicated region
        $region65: #{tpu_custom_call.1} parent=63 // pred_check
          %p2331 = pneg %p241
        $region66: #{tpu_custom_call.1} parent=63 // pred_check_branch
          %2333 = sbr.rel (%p2331) target = $region68
        $region67: #{tpu_custom_call.1} parent=63 // pred_region
          %s2334 = sand.u32 %s226, 1
          %s2335 = scalar_lea.sflag [#allocation3], %s2334
          %s2336 = sand.u32 %s226, 1
          %s2337 = smul.addr %s2336, 64
          %s2338 = scalar_lea.vmem [#allocation2], %s2337
          %2339 = dma.done %s2335, 1024
        $region68: #{tpu_custom_call.1} parent=63 // pred_fallthru
          _
      $region64: #{tpu_custom_call.1} parent=5 // pred_fallthru
        _
    $region6: #{tpu_custom_call.1} parent=1 // loop_footer
      %s22 = sadd.s32 1, %s18
    $region7: #{tpu_custom_call.1} parent=1 // loop_footer_branch
      %17 = sbr.rel target = $region3
    $region8: #{tpu_custom_call.1} parent=1 // loop_exit
      _
    %2340 = vsyncpa [#allocation3], 1
    %s2341 = scalar_lea.sflag [#allocation3], 1
    %2342 = vsyncpa %s2341, 1

</llo_original>
